<compile_context>
chip_gen: v7x
topology: tpu7x:2x2x1
jax: 0.10.0
libtpu: 0.0.40
codegen_flags: <defaults>
</compile_context>

<pallas_src>
import functools

import jax
import jax.numpy as jnp
from jax.experimental import pallas as pl
from jax.experimental.pallas import tpu as pltpu


def _stsc_kernel(x_ref, wconv_ref, bconv_ref, wlin_ref, out_ref, acc_ref,
                 *, K, pad, T_out, HW, hw_chunk, n_hw):
    # x_ref:     (T, Bblk, C, hw_chunk)  native [T, B, C, HW] layout chunk
    # wconv_ref: (K*C, r)   conv1d taps in im2col layout (row = k*C + c)
    # bconv_ref: (1, r)
    # wlin_ref:  (r, C)     linear weight, pre-transposed
    # out_ref:   (1, T_out, Bblk, C)
    # acc_ref:   (T, Bblk, C) f32 scratch -- spatial-sum accumulator
    h = pl.program_id(1)

    # ---- spatial (HW) partial reduction for this chunk, whole block at once ----
    xf = x_ref[...].astype(jnp.float32)                     # (T, Bblk, C, hw_chunk)
    if n_hw > 1 and (HW % hw_chunk) != 0:
        # Mask the out-of-range lanes of the last (partial) HW chunk.
        lane = jax.lax.broadcasted_iota(jnp.int32, (1, hw_chunk), 1)
        valid = (h * hw_chunk + lane) < HW                  # (1, hw_chunk)
        xf = jnp.where(valid[None, None], xf, 0.0)
    part = jnp.sum(xf, axis=-1)                             # (T, Bblk, C)

    @pl.when(h == 0)
    def _init():
        acc_ref[...] = jnp.zeros_like(acc_ref)

    acc_ref[...] = acc_ref[...] + part

    # ---- epilogue: conv1d (im2col) + ReLU + Linear + (1 - sigmoid) ----
    @pl.when(h == n_hw - 1)
    def _finalize():
        T, bblk, C = acc_ref.shape
        mean = acc_ref[...] * (1.0 / HW)                    # (T, Bblk, C)

        # Zero-pad the time axis in registers (no VMEM scratch roundtrip).
        if pad > 0:
            z = jnp.zeros((pad, bblk, C), jnp.float32)
            padded = jnp.concatenate([z, mean, z], axis=0)  # (T+2p, Bblk, C)
        else:
            padded = mean

        # im2col along time: cols[t, b, k*C + c] = padded[t + k, b, c]
        cols = jnp.concatenate(
            [padded[k:k + T_out] for k in range(K)], axis=-1)   # (T_out, Bblk, K*C)
        cols2 = cols.reshape(T_out * bblk, K * C)

        # One fused MXU matmul for every (t, b) row in the block + bias.
        s = jnp.dot(cols2, wconv_ref[...],
                    preferred_element_type=jnp.float32) + bconv_ref[...]
        hrelu = jnp.maximum(s, 0.0)                         # (T_out*Bblk, r)
        y = jnp.dot(hrelu, wlin_ref[...],
                    preferred_element_type=jnp.float32)     # (T_out*Bblk, C)
        d = 1.0 - jax.nn.sigmoid(y)
        out_ref[0] = d.reshape(T_out, bblk, C).astype(out_ref.dtype)


# ---------------------------------------------------------------------------
# VMEM budgeting (per-generation) and tiling selection.
# ---------------------------------------------------------------------------
def _round_up(n, m):
    return -(-n // m) * m


def _sublanes(itemsize):
    # f32 -> 8, bf16 -> 16, int8/fp8 -> 32 sublane packing.
    return max(8, 32 // itemsize)


def _padded_tile_bytes(lead, sub, lane, itemsize):
    """VMEM footprint of a block whose last two dims are (sub, lane)."""
    return lead * _round_up(sub, _sublanes(itemsize)) * _round_up(lane, 128) * itemsize


def _vmem_capacity_bytes():
    try:
        info = pltpu.get_tpu_info()
        cap = getattr(info, "vmem_capacity_bytes", None)
        if cap:
            return int(cap)
    except Exception:
        pass
    return 64 << 20  # conservative: v7x per-TensorCore VMEM


def _vmem_plan():
    cap = _vmem_capacity_bytes()
    # v5e/v6e (128 MiB physical): 112 MiB scoped limit; v7x (64 MiB): 56 MiB.
    limit = min(cap - (cap >> 3), 112 << 20)
    budget = max(limit - (8 << 20), limit // 2)   # headroom for compiler scratch
    return int(limit), int(budget)


def _choose_tiling(T, B, C, HW, T_out, K, r, x_itemsize, out_itemsize, budget):
    # Weights are tiny but double-buffered like every BlockSpec operand.
    fixed = 2 * (_padded_tile_bytes(1, K * C, r, 4)
                 + _padded_tile_bytes(1, 1, r, 4)
                 + _padded_tile_bytes(1, r, C, 4))

    def fits(bblk, hw_chunk):
        need = (fixed
                + 2 * _padded_tile_bytes(T * bblk, C, hw_chunk, x_itemsize)  # x, dbl-buf
                + 2 * _padded_tile_bytes(T_out, bblk, C, out_itemsize)       # out, dbl-buf
                + _padded_tile_bytes(T, bblk, C, 4))                         # accumulator
        return need <= budget

    # Largest batch chunk (divisor of B) that fits without HW chunking; keep
    # >= 2 grid steps along the parallel axis when B >= 2 (both v7x cores).
    max_bblk = B if B < 2 else max(1, B // 2)
    for bblk in range(max_bblk, 0, -1):
        if B % bblk == 0 and fits(bblk, HW):
            return bblk, HW, 1

    # Even a single-batch block is too big (large C*H*W): chunk the spatial
    # axis in multiples of 128 lanes and accumulate across an inner grid axis.
    if HW <= 128:
        return 1, HW, 1          # cannot subdivide the lane axis further
    n128 = pl.cdiv(HW, 128)
    for chunks in range(n128 - 1, 0, -1):
        hw_chunk = chunks * 128
        if fits(1, hw_chunk):
            return 1, hw_chunk, pl.cdiv(HW, hw_chunk)
    return 1, 128, pl.cdiv(HW, 128)


# ---------------------------------------------------------------------------
# Wrapper
# ---------------------------------------------------------------------------
def stsc_attention(x_seq, w_conv, b_conv, w_lin, *, time_rf=4,
                   x_compute_dtype=jnp.bfloat16):
    """STSC_Attention dimension=4 forward. x_seq: [T, B, C, H, W] -> D: [T_out, B, C].

    w_conv: [r, C, K] (PyTorch Conv1d weight), b_conv: [r],
    w_lin:  [C, r]    (PyTorch Linear weight, out x in).
    """
    T, B, C, H, W = x_seq.shape
    K = time_rf
    pad = (time_rf - 1) // 2
    T_out = T + 2 * pad - K + 1
    r = w_conv.shape[0]
    HW = H * W
    out_dtype = x_seq.dtype

    # Free reshape only (merges contiguous trailing dims) -- no x transpose.
    x = x_seq.reshape(T, B, C, HW)
    if x_compute_dtype is not None and x.dtype != x_compute_dtype:
        # bf16 halves the dominant HBM read; in a real model the activation
        # producer should emit bf16 directly so this cast is free.
        x = x.astype(x_compute_dtype)

    # Conv weight -> im2col layout: row index k*C + c, column o.
    w_im2col = jnp.transpose(w_conv, (2, 1, 0)).reshape(K * C, r).astype(jnp.float32)
    bconv = b_conv.reshape(1, r).astype(jnp.float32)
    wlin_rc = jnp.transpose(w_lin, (1, 0)).astype(jnp.float32)

    vmem_limit, vmem_budget = _vmem_plan()
    bblk, hw_chunk, n_hw = _choose_tiling(
        T, B, C, HW, T_out, K, r,
        jnp.dtype(x.dtype).itemsize, jnp.dtype(out_dtype).itemsize, vmem_budget)
    nb = B // bblk

    kernel = functools.partial(
        _stsc_kernel, K=K, pad=pad, T_out=T_out, HW=HW,
        hw_chunk=hw_chunk, n_hw=n_hw)

    out = pl.pallas_call(
        kernel,
        out_shape=jax.ShapeDtypeStruct((nb, T_out, bblk, C), out_dtype),
        grid_spec=pltpu.PrefetchScalarGridSpec(
            num_scalar_prefetch=0,
            grid=(nb, n_hw),
            in_specs=[
                pl.BlockSpec((T, bblk, C, hw_chunk), lambda b, h: (0, b, 0, h)),
                pl.BlockSpec((K * C, r), lambda b, h: (0, 0)),
                pl.BlockSpec((1, r), lambda b, h: (0, 0)),
                pl.BlockSpec((r, C), lambda b, h: (0, 0)),
            ],
            out_specs=pl.BlockSpec((1, T_out, bblk, C), lambda b, h: (b, 0, 0, 0)),
            scratch_shapes=[pltpu.VMEM((T, bblk, C), jnp.float32)],
        ),
        compiler_params=pltpu.CompilerParams(
            dimension_semantics=("parallel", "arbitrary"),
            vmem_limit_bytes=vmem_limit),
    )(x, w_im2col, bconv, wlin_rc)

    # Only the tiny (HW-free) output is rearranged:
    # (nb, T_out, bblk, C) -> (T_out, nb*bblk, C) == (T_out, B, C).
    return jnp.transpose(out, (1, 0, 2, 3)).reshape(T_out, B, C)


if __name__ == "__main__":
    key = jax.random.PRNGKey(0)
    T, B, C, H, W = 8, 2, 8, 4, 4
    n_channel, reduction, time_rf = C, 2, 4
    r = n_channel // reduction

    k1, k2, k3, k4 = jax.random.split(key, 4)
    x_seq = jax.random.normal(k1, (T, B, C, H, W), jnp.float32)
    # Deterministic synthetic parameters (shapes from the module's __init__).
    w_conv = 0.1 * jax.random.normal(k2, (r, n_channel, time_rf), jnp.float32)
    b_conv = 0.1 * jax.random.normal(k3, (r,), jnp.float32)
    w_lin = 0.1 * jax.random.normal(k4, (n_channel, r), jnp.float32)

    out = jax.block_until_ready(
        stsc_attention(x_seq, w_conv, b_conv, w_lin, time_rf=time_rf))

    # Pure-JAX reference of the same forward pass (same bf16 pooling input as
    # the kernel's default compute path; everything after the cast is f32).
    pad = (time_rf - 1) // 2
    T_out = T + 2 * pad - time_rf + 1
    x_ref = x_seq.astype(jnp.bfloat16).astype(jnp.float32)
    avg = jnp.mean(x_ref, axis=(3, 4))                      # [T, B, C]
    avg_bct = jnp.transpose(avg, (1, 2, 0))                 # [B, C, T]
    padded = jnp.pad(avg_bct, ((0, 0), (0, 0), (pad, pad)))
    conv = sum(
        jnp.einsum('bct,oc->bot', padded[:, :, k:k + T_out], w_conv[:, :, k])
        for k in range(time_rf)) + b_conv[None, :, None]    # [B, r, T_out]
    hid = jnp.maximum(jnp.transpose(conv, (0, 2, 1)), 0.0)  # [B, T_out, r]
    y = hid @ w_lin.T                                       # [B, T_out, C]
    ref = jnp.transpose(1.0 - jax.nn.sigmoid(y), (1, 0, 2))

    assert out.shape == (T_out, B, C), out.shape
    err = float(jnp.max(jnp.abs(out.astype(jnp.float32) - ref)))
    assert err < 2e-4, err
    print("KERNEL_OK")
</pallas_src>

<mosaic_0001>
module attributes {stable_mosaic.version = 11 : i64} {
  func.func @_stsc_kernel(%arg0: i32, %arg1: i32, %arg2: memref<8x1x8x16xbf16, #tpu.memory_space<vmem>>, %arg3: memref<32x4xf32, #tpu.memory_space<vmem>>, %arg4: memref<1x4xf32, #tpu.memory_space<vmem>>, %arg5: memref<4x8xf32, #tpu.memory_space<vmem>>, %arg6: memref<1x7x1x8xf32, #tpu.memory_space<vmem>>, %arg7: memref<8x1x8xf32, #tpu.memory_space<vmem>>) attributes {dimension_semantics = [#tpu.dimension_semantics<parallel>, #tpu.dimension_semantics<arbitrary>], iteration_bounds = array<i64: 2, 1>, scalar_prefetch = 0 : i64, scratch_operands = 1 : i64, tpu.core_type = #tpu.core_type<tc>, window_params = [{transform_indices = @transform_0, window_bounds = array<i64: 8, 1, 8, 16>}, {pipeline_mode = #tpu.pipeline_mode<synchronous>, transform_indices = @transform_1, window_bounds = array<i64: 32, 4>}, {pipeline_mode = #tpu.pipeline_mode<synchronous>, transform_indices = @transform_2, window_bounds = array<i64: 1, 4>}, {pipeline_mode = #tpu.pipeline_mode<synchronous>, transform_indices = @transform_3, window_bounds = array<i64: 4, 8>}, {transform_indices = @transform_4, window_bounds = array<i64: 1, 7, 1, 8>}]} {
    %c0 = arith.constant 0 : index
    %c0_0 = arith.constant 0 : index
    %c0_1 = arith.constant 0 : index
    %c0_2 = arith.constant 0 : index
    %0 = vector.load %arg2[%c0, %c0_0, %c0_1, %c0_2] : memref<8x1x8x16xbf16, #tpu.memory_space<vmem>>, vector<8x1x8x16xbf16>
    %1 = arith.extf %0 : vector<8x1x8x16xbf16> to vector<8x1x8x16xf32>
    %cst = arith.constant dense<0.000000e+00> : vector<8x1x8xf32>
    %2 = vector.multi_reduction <add>, %1, %cst [3] : vector<8x1x8x16xf32> to vector<8x1x8xf32>
    %c0_i32 = arith.constant 0 : i32
    %3 = arith.cmpi eq, %arg1, %c0_i32 : i32
    %4 = arith.extui %3 : i1 to i32
    %c0_i32_3 = arith.constant 0 : i32
    %5 = arith.cmpi ne, %4, %c0_i32_3 : i32
    scf.if %5 {
      %cst_12 = arith.constant 0.000000e+00 : f32
      %12 = vector.broadcast %cst_12 : f32 to vector<8x1x8xf32>
      %c0_13 = arith.constant 0 : index
      %c0_14 = arith.constant 0 : index
      %c0_15 = arith.constant 0 : index
      %13 = vector.load %arg7[%c0_13, %c0_14, %c0_15] : memref<8x1x8xf32, #tpu.memory_space<vmem>>, vector<8x1x8xf32>
      tpu.vector_store %arg7[%c0_13, %c0_14, %c0_15], %12 {strides = array<i32>} : memref<8x1x8xf32, #tpu.memory_space<vmem>>, vector<8x1x8xf32>,
    } else {
    }
    %c0_4 = arith.constant 0 : index
    %c0_5 = arith.constant 0 : index
    %c0_6 = arith.constant 0 : index
    %6 = vector.load %arg7[%c0_4, %c0_5, %c0_6] : memref<8x1x8xf32, #tpu.memory_space<vmem>>, vector<8x1x8xf32>
    %7 = arith.addf %6, %2 : vector<8x1x8xf32>
    %c0_7 = arith.constant 0 : index
    %c0_8 = arith.constant 0 : index
    %c0_9 = arith.constant 0 : index
    %8 = vector.load %arg7[%c0_7, %c0_8, %c0_9] : memref<8x1x8xf32, #tpu.memory_space<vmem>>, vector<8x1x8xf32>
    tpu.vector_store %arg7[%c0_7, %c0_8, %c0_9], %7 {strides = array<i32>} : memref<8x1x8xf32, #tpu.memory_space<vmem>>, vector<8x1x8xf32>,
    %c0_i32_10 = arith.constant 0 : i32
    %9 = arith.cmpi eq, %arg1, %c0_i32_10 : i32
    %10 = arith.extui %9 : i1 to i32
    %c0_i32_11 = arith.constant 0 : i32
    %11 = arith.cmpi ne, %10, %c0_i32_11 : i32
    scf.if %11 {
      %c0_12 = arith.constant 0 : index
      %c0_13 = arith.constant 0 : index
      %c0_14 = arith.constant 0 : index
      %12 = vector.load %arg7[%c0_12, %c0_13, %c0_14] : memref<8x1x8xf32, #tpu.memory_space<vmem>>, vector<8x1x8xf32>
      %cst_15 = arith.constant 6.250000e-02 : f32
      %13 = vector.broadcast %cst_15 : f32 to vector<8x1x8xf32>
      %14 = arith.mulf %12, %13 : vector<8x1x8xf32>
      %cst_16 = arith.constant 0.000000e+00 : f32
      %15 = vector.broadcast %cst_16 : f32 to vector<1x1x8xf32>
      %16 = tpu.concatenate %15, %14, %15 in 0 : vector<1x1x8xf32>, vector<8x1x8xf32>, vector<1x1x8xf32> -> vector<10x1x8xf32>
      %17 = vector.extract_strided_slice %16 {offsets = [0, 0, 0], sizes = [7, 1, 8], strides = [1, 1, 1]} : vector<10x1x8xf32> to vector<7x1x8xf32>
      %18 = vector.extract_strided_slice %16 {offsets = [1, 0, 0], sizes = [7, 1, 8], strides = [1, 1, 1]} : vector<10x1x8xf32> to vector<7x1x8xf32>
      %19 = vector.extract_strided_slice %16 {offsets = [2, 0, 0], sizes = [7, 1, 8], strides = [1, 1, 1]} : vector<10x1x8xf32> to vector<7x1x8xf32>
      %20 = vector.extract_strided_slice %16 {offsets = [3, 0, 0], sizes = [7, 1, 8], strides = [1, 1, 1]} : vector<10x1x8xf32> to vector<7x1x8xf32>
      %21 = tpu.concatenate %17, %18, %19, %20 in 2 : vector<7x1x8xf32>, vector<7x1x8xf32>, vector<7x1x8xf32>, vector<7x1x8xf32> -> vector<7x1x32xf32>
      %22 = vector.shape_cast %21 : vector<7x1x32xf32> to vector<7x32xf32>
      %c0_17 = arith.constant 0 : index
      %c0_18 = arith.constant 0 : index
      %23 = vector.load %arg3[%c0_17, %c0_18] : memref<32x4xf32, #tpu.memory_space<vmem>>, vector<32x4xf32>
      %cst_19 = arith.constant dense<0.000000e+00> : vector<7x4xf32>
      %24 = tpu.matmul %22, %23, %cst_19 {dimension_numbers = #tpu.dot_dimension_numbers<[1], [0], [0], [1], [0, 0, 1, 1], [], []>} : vector<7x32xf32>, vector<32x4xf32>, vector<7x4xf32> -> vector<7x4xf32>
      %c0_20 = arith.constant 0 : index
      %c0_21 = arith.constant 0 : index
      %25 = vector.load %arg4[%c0_20, %c0_21] : memref<1x4xf32, #tpu.memory_space<vmem>>, vector<1x4xf32>
      %26 = vector.broadcast %25 : vector<1x4xf32> to vector<7x4xf32>
      %27 = arith.addf %24, %26 : vector<7x4xf32>
      %cst_22 = arith.constant 0.000000e+00 : f32
      %28 = vector.broadcast %cst_22 : f32 to vector<7x4xf32>
      %29 = arith.maximumf %27, %28 : vector<7x4xf32>
      %c0_23 = arith.constant 0 : index
      %c0_24 = arith.constant 0 : index
      %30 = vector.load %arg5[%c0_23, %c0_24] : memref<4x8xf32, #tpu.memory_space<vmem>>, vector<4x8xf32>
      %cst_25 = arith.constant dense<0.000000e+00> : vector<7x8xf32>
      %31 = tpu.matmul %29, %30, %cst_25 {dimension_numbers = #tpu.dot_dimension_numbers<[1], [0], [0], [1], [0, 0, 1, 1], [], []>} : vector<7x4xf32>, vector<4x8xf32>, vector<7x8xf32> -> vector<7x8xf32>
      %32 = arith.negf %31 : vector<7x8xf32>
      %33 = math.exp %32 : vector<7x8xf32>
      %cst_26 = arith.constant 1.000000e+00 : f32
      %34 = vector.broadcast %cst_26 : f32 to vector<7x8xf32>
      %35 = arith.addf %34, %33 : vector<7x8xf32>
      %36 = arith.divf %34, %35 : vector<7x8xf32>
      %cst_27 = arith.constant 1.000000e+00 : f32
      %37 = vector.broadcast %cst_27 : f32 to vector<7x8xf32>
      %38 = arith.subf %37, %36 : vector<7x8xf32>
      %39 = vector.shape_cast %38 : vector<7x8xf32> to vector<7x1x8xf32>
      %c0_28 = arith.constant 0 : index
      %c0_29 = arith.constant 0 : index
      %c0_30 = arith.constant 0 : index
      %c0_31 = arith.constant 0 : index
      %40 = vector.load %arg6[%c0_28, %c0_29, %c0_30, %c0_31] : memref<1x7x1x8xf32, #tpu.memory_space<vmem>>, vector<1x7x1x8xf32>
      %41 = vector.shape_cast %40 : vector<1x7x1x8xf32> to vector<7x1x8xf32>
      %42 = vector.shape_cast %39 : vector<7x1x8xf32> to vector<1x7x1x8xf32>
      tpu.vector_store %arg6[%c0_28, %c0_29, %c0_30, %c0_31], %42 {strides = array<i32>} : memref<1x7x1x8xf32, #tpu.memory_space<vmem>>, vector<1x7x1x8xf32>,
    } else {
    }
    return
  }
  func.func @transform_0(%arg0: i32, %arg1: i32) -> (i32, i32, i32, i32) {
    %c0_i32 = arith.constant 0 : i32
    %c0_i32_0 = arith.constant 0 : i32
    %c0_i32_1 = arith.constant 0 : i32
    return %c0_i32, %arg0, %c0_i32_0, %arg1 : i32, i32, i32, i32
  }
  func.func @transform_1(%arg0: i32, %arg1: i32) -> (i32, i32) {
    %c0_i32 = arith.constant 0 : i32
    %c0_i32_0 = arith.constant 0 : i32
    %c0_i32_1 = arith.constant 0 : i32
    return %c0_i32, %c0_i32_0 : i32, i32
  }
  func.func @transform_2(%arg0: i32, %arg1: i32) -> (i32, i32) {
    %c0_i32 = arith.constant 0 : i32
    %c0_i32_0 = arith.constant 0 : i32
    %c0_i32_1 = arith.constant 0 : i32
    return %c0_i32, %c0_i32_0 : i32, i32
  }
  func.func @transform_3(%arg0: i32, %arg1: i32) -> (i32, i32) {
    %c0_i32 = arith.constant 0 : i32
    %c0_i32_0 = arith.constant 0 : i32
    %c0_i32_1 = arith.constant 0 : i32
    return %c0_i32, %c0_i32_0 : i32, i32
  }
  func.func @transform_4(%arg0: i32, %arg1: i32) -> (i32, i32, i32, i32) {
    %c0_i32 = arith.constant 0 : i32
    %c0_i32_0 = arith.constant 0 : i32
    %c0_i32_1 = arith.constant 0 : i32
    %c0_i32_2 = arith.constant 0 : i32
    return %arg0, %c0_i32, %c0_i32_0, %c0_i32_1 : i32, i32, i32, i32
  }
}

</mosaic_0001>

<llo_original>
// kernel: tpu_custom_call.1
$region0: #{tpu_custom_call.1}
  #allocation0 [shape = 'u32[]', space=smem, size = 0x4, offset = 0x4, fixed_abs, tag = 'smem constant byte address 0x4 - core index']
  #allocation1 [shape = 'u32[144,128]{1,0:T(1,128)}', space=vmem, size = 0x12000, scoped, tag = 'internal scratch']
  #allocation2 [shape = 'f32[8,1,8]{2,1,0:T(1,128)}', space=vmem, size = 0x1000, scoped, tag = 'scratch operand']
  %s0 = inlined_call_operand.hbm [shape: bf16[8,2,8,16], index: 0, kind: input, shape index: {}]
  %s1 = inlined_call_operand.vmem [shape: f32[32,4], index: 1, kind: input, shape index: {}]
  %s2 = inlined_call_operand.vmem [shape: f32[1,4], index: 2, kind: input, shape index: {}]
  %s3 = inlined_call_operand.vmem [shape: f32[4,8], index: 3, kind: input, shape index: {}]
  %s4 = inlined_call_operand.hbm [shape: f32[2,7,1,8], index: 4, kind: output, shape index: {}]
  %s5 = sld [smem:[#allocation0]]
  $region61: #{tpu_custom_call.1} parent=0
    _
  %s7 = ssub.s32 1, %s5
  %s8 = scalar_select 0, %s7, %s5
  $region1: #{tpu_custom_call.1} parent=0
    #allocation3 [shape = 'u8[32768]{0}', space=vmem, size = 0x8000, scoped, tag = 'input window, operand 0']
    #allocation4 [shape = 's32[2]{0}', space=sflag, size = 0x8, scoped, tag = 'scoped memory for tpu_custom_call.1']
    #allocation5 [shape = 's32[2]{0}', space=sflag, size = 0x8, scoped, tag = 'scoped memory for tpu_custom_call.1']
    #allocation6 [shape = 'u8[7168]{0}', space=vmem, size = 0x1c00, scoped, tag = 'output window, operand 0']
    %9 = vsyncpa [#allocation4], 0
    %s10 = scalar_lea.sflag [#allocation4], 1
    %11 = vsyncpa %s10, 0
    %12 = vsyncpa [#allocation5], 0
    %s13 = scalar_lea.sflag [#allocation5], 1
    %14 = vsyncpa %s13, 0
    loop: start=0, step=1, limit=4
    $region2: #{tpu_custom_call.1} parent=1 // loop_pre_header
      _
    $region3: #{tpu_custom_call.1} parent=1 // loop_header
      %s16 = sphi 0, %s20
      %p17 = scmp.ge.s32.totalorder %s16, 4
      %s23 = sphi 0, %s35
      %s24 = sphi 0, %s31
      %s25 = sphi 0, %s23
      %s26 = sphi 0, %s24
      %s27 = sphi 0, %s25
      %s28 = sphi 0, %s26
      %s40 = sphi 0, %s42
      %s43 = sphi 0, %s40
      %s44 = sphi 0, %s43
      %s60 = sphi 0, %s44
      %s64 = sphi 0, %s64
      %s66 = sphi 0, %s64
      %s67 = sphi 0, %s66
      %s81 = sphi 0, %s67
      %s85 = sphi 0, %s85
      %s87 = sphi 0, %s85
      %s88 = sphi 0, %s87
      %s102 = sphi 0, %s88
      %s106 = sphi 0, %s106
      %s108 = sphi 0, %s106
      %s109 = sphi 0, %s108
      %s123 = sphi 0, %s109
      %s129 = sphi 0, %s131
      %s132 = sphi 0, %s129
      %s133 = sphi 0, %s132
      %s149 = sphi 0, %s133
    $region4: #{tpu_custom_call.1} parent=1 // loop_header_branch
      %19 = sbr.rel (%p17) target = $region8
    $region5: #{tpu_custom_call.1} parent=1 // loop_body
      %s21 = ssub.s32 %s16, 1
      %s22 = ssub.s32 %s16, 2
      %s29 = sadd.s32 1, %s24
      %p30 = scmp.ge.s32.totalorder %s29, 1
      %s31 = scalar_select %p30, 0, %s29
      %s32 = sadd.s32 1, %s23
      %s33 = scalar_select %p30, %s32, %s23
      %p34 = scmp.ge.s32.totalorder %s33, 2
      %s35 = scalar_select %p34, 0, %s33
      %s36 = ssub.s32 %s23, %s35
      %s37 = ssub.s32 %s24, %s31
      %s38 = sor.u32 %s36, %s37
      %p39 = scmp.eq.s32.totalorder %s38, 0
      %s41 = sadd.s32 %s40, 1
      %s42 = scalar_select %p39, %s40, %s41
      %p45 = pneg %p39
      %p46 = scmp.eq.s32.totalorder %s16, 1
      %p47 = por %p45, %p46
      %p48 = scmp.ne.s32.totalorder %s40, %s43
      %p49 = scmp.eq.s32.totalorder %s16, 0
      %p50 = por %p48, %p49
      %p51 = scmp.ne.s32.totalorder %s40, %s43
      %p52 = scmp.eq.s32.totalorder %s21, 1
      %p53 = por %p51, %p52
      %p54 = scmp.ne.s32.totalorder %s43, %s44
      %p55 = scmp.eq.s32.totalorder %s21, 0
      %p56 = por %p54, %p55
      %p57 = scmp.ne.s32.totalorder %s43, %s44
      %p58 = scmp.eq.s32.totalorder %s22, 1
      %p59 = por %p57, %p58
      %p61 = scmp.ne.s32.totalorder %s44, %s60
      %p62 = scmp.eq.s32.totalorder %s22, 0
      %p63 = por %p61, %p62
      %s65 = sadd.s32 %s64, 1
      %p68 = scmp.eq.s32.totalorder %s16, 1
      %p69 = scmp.ne.s32.totalorder %s64, %s66
      %p70 = scmp.eq.s32.totalorder %s16, 0
      %p71 = por %p69, %p70
      %p72 = scmp.ne.s32.totalorder %s64, %s66
      %p73 = scmp.eq.s32.totalorder %s21, 1
      %p74 = por %p72, %p73
      %p75 = scmp.ne.s32.totalorder %s66, %s67
      %p76 = scmp.eq.s32.totalorder %s21, 0
      %p77 = por %p75, %p76
      %p78 = scmp.ne.s32.totalorder %s66, %s67
      %p79 = scmp.eq.s32.totalorder %s22, 1
      %p80 = por %p78, %p79
      %p82 = scmp.ne.s32.totalorder %s67, %s81
      %p83 = scmp.eq.s32.totalorder %s22, 0
      %p84 = por %p82, %p83
      %s86 = sadd.s32 %s85, 1
      %p89 = scmp.eq.s32.totalorder %s16, 1
      %p90 = scmp.ne.s32.totalorder %s85, %s87
      %p91 = scmp.eq.s32.totalorder %s16, 0
      %p92 = por %p90, %p91
      %p93 = scmp.ne.s32.totalorder %s85, %s87
      %p94 = scmp.eq.s32.totalorder %s21, 1
      %p95 = por %p93, %p94
      %p96 = scmp.ne.s32.totalorder %s87, %s88
      %p97 = scmp.eq.s32.totalorder %s21, 0
      %p98 = por %p96, %p97
      %p99 = scmp.ne.s32.totalorder %s87, %s88
      %p100 = scmp.eq.s32.totalorder %s22, 1
      %p101 = por %p99, %p100
      %p103 = scmp.ne.s32.totalorder %s88, %s102
      %p104 = scmp.eq.s32.totalorder %s22, 0
      %p105 = por %p103, %p104
      %s107 = sadd.s32 %s106, 1
      %p110 = scmp.eq.s32.totalorder %s16, 1
      %p111 = scmp.ne.s32.totalorder %s106, %s108
      %p112 = scmp.eq.s32.totalorder %s16, 0
      %p113 = por %p111, %p112
      %p114 = scmp.ne.s32.totalorder %s106, %s108
      %p115 = scmp.eq.s32.totalorder %s21, 1
      %p116 = por %p114, %p115
      %p117 = scmp.ne.s32.totalorder %s108, %s109
      %p118 = scmp.eq.s32.totalorder %s21, 0
      %p119 = por %p117, %p118
      %p120 = scmp.ne.s32.totalorder %s108, %s109
      %p121 = scmp.eq.s32.totalorder %s22, 1
      %p122 = por %p120, %p121
      %p124 = scmp.ne.s32.totalorder %s109, %s123
      %p125 = scmp.eq.s32.totalorder %s22, 0
      %p126 = por %p124, %p125
      %s127 = ssub.s32 %s23, %s35
      %p128 = scmp.eq.s32.totalorder %s127, 0
      %s130 = sadd.s32 %s129, 1
      %s131 = scalar_select %p128, %s129, %s130
      %p134 = pneg %p128
      %p135 = scmp.eq.s32.totalorder %s16, 1
      %p136 = por %p134, %p135
      %p137 = scmp.ne.s32.totalorder %s129, %s132
      %p138 = scmp.eq.s32.totalorder %s16, 0
      %p139 = por %p137, %p138
      %p140 = scmp.ne.s32.totalorder %s129, %s132
      %p141 = scmp.eq.s32.totalorder %s21, 1
      %p142 = por %p140, %p141
      %p143 = scmp.ne.s32.totalorder %s132, %s133
      %p144 = scmp.eq.s32.totalorder %s21, 0
      %p145 = por %p143, %p144
      %p146 = scmp.ne.s32.totalorder %s132, %s133
      %p147 = scmp.eq.s32.totalorder %s22, 1
      %p148 = por %p146, %p147
      %p150 = scmp.ne.s32.totalorder %s133, %s149
      %p151 = scmp.eq.s32.totalorder %s22, 0
      %p152 = por %p150, %p151
      %p153 = scmp.le.s32.totalorder 1, %s16
      %p154 = scmp.lt.s32.totalorder %s16, 3
      %p155 = pnand %p153, %p154
      %p156 = pneg %p155
      // Predicated region
      $region9: #{tpu_custom_call.1} parent=5 // pred_check
        _
      $region10: #{tpu_custom_call.1} parent=5 // pred_check_branch
        %158 = sbr.rel (%p155) target = $region12
      $region11: #{tpu_custom_call.1} parent=5 // pred_region
        %s159 = ssub.s32 %s16, 1
        // Predicated region
        $region13: #{tpu_custom_call.1} parent=11 // pred_check
          %p160 = pneg %p77
        $region14: #{tpu_custom_call.1} parent=11 // pred_check_branch
          %162 = sbr.rel (%p160) target = $region16
        $region15: #{tpu_custom_call.1} parent=11 // pred_region
          _
        $region16: #{tpu_custom_call.1} parent=11 // pred_fallthru
          _
        // Predicated region
        $region17: #{tpu_custom_call.1} parent=11 // pred_check
          %p163 = pneg %p98
        $region18: #{tpu_custom_call.1} parent=11 // pred_check_branch
          %165 = sbr.rel (%p163) target = $region20
        $region19: #{tpu_custom_call.1} parent=11 // pred_region
          _
        $region20: #{tpu_custom_call.1} parent=11 // pred_fallthru
          _
        // Predicated region
        $region21: #{tpu_custom_call.1} parent=11 // pred_check
          %p166 = pneg %p119
        $region22: #{tpu_custom_call.1} parent=11 // pred_check_branch
          %168 = sbr.rel (%p166) target = $region24
        $region23: #{tpu_custom_call.1} parent=11 // pred_region
          _
        $region24: #{tpu_custom_call.1} parent=11 // pred_fallthru
          _
      $region12: #{tpu_custom_call.1} parent=5 // pred_fallthru
        _
      %p169 = scmp.lt.s32.totalorder %s16, 2
      // Predicated region
      $region25: #{tpu_custom_call.1} parent=5 // pred_check
        %p170 = pneg %p169
      $region26: #{tpu_custom_call.1} parent=5 // pred_check_branch
        %172 = sbr.rel (%p170) target = $region28
      $region27: #{tpu_custom_call.1} parent=5 // pred_region
        // Predicated region
        $region29: #{tpu_custom_call.1} parent=27 // pred_check
          %p173 = pneg %p50
        $region30: #{tpu_custom_call.1} parent=27 // pred_check_branch
          %175 = sbr.rel (%p173) target = $region32
        $region31: #{tpu_custom_call.1} parent=27 // pred_region
          %s176 = sand.u32 %s40, 1
          %s177 = scalar_lea.sflag [#allocation4], %s176
          %s178 = sand.u32 %s40, 1
          %s179 = smul.addr %s178, 32
          %s180 = scalar_lea.vmem [#allocation3], %s179
          %s182 = ssub.s32 512, 512
          %183 = vsyncadd %s177, %s182
          %s184 = sadd.s32 %s24, %s23
          %s185 = smul.addr %s184, 64
          %s186 = scalar_lea.hbm %s0, %s185
          %s187 = sshll.u32 %s180, 4
          %s188 = int_to_ptr.vmem [resolvable:$true] %s187
          %193 = dma.hbm_to_vmem [thread:$0]  %s186, 512, %s188, %s177, 128, 64, 4
        $region32: #{tpu_custom_call.1} parent=27 // pred_fallthru
          _
      $region28: #{tpu_custom_call.1} parent=5 // pred_fallthru
        _
      %p194 = scmp.le.s32.totalorder 1, %s16
      %p195 = scmp.lt.s32.totalorder %s16, 3
      %p196 = pnand %p194, %p195
      %p197 = pneg %p196
      // Predicated region
      $region33: #{tpu_custom_call.1} parent=5 // pred_check
        _
      $region34: #{tpu_custom_call.1} parent=5 // pred_check_branch
        %199 = sbr.rel (%p196) target = $region36
      $region35: #{tpu_custom_call.1} parent=5 // pred_region
        %s200 = ssub.s32 %s16, 1
        %s201 = sand.u32 %s43, 1
        %s202 = scalar_lea.sflag [#allocation4], %s201
        %s203 = sand.u32 %s43, 1
        %s204 = smul.addr %s203, 32
        %s205 = scalar_lea.vmem [#allocation3], %s204
        // Predicated region
        $region37: #{tpu_custom_call.1} parent=35 // pred_check
          %p206 = pneg %p56
        $region38: #{tpu_custom_call.1} parent=35 // pred_check_branch
          %208 = sbr.rel (%p206) target = $region40
        $region39: #{tpu_custom_call.1} parent=35 // pred_region
          %209 = dma.done %s202, 512
        $region40: #{tpu_custom_call.1} parent=35 // pred_fallthru
          _
        %s210 = sand.u32 %s43, 1
        %s211 = scalar_lea.sflag [#allocation4], %s210
        %s212 = sand.u32 %s43, 1
        %s213 = smul.addr %s212, 32
        %s214 = scalar_lea.vmem [#allocation3], %s213
        %p215 = pneg %p56
        %p216 = pneg %p53
        %p217 = pneg %p77
        %p218 = pneg %p74
        %p219 = pneg %p98
        %p220 = pneg %p95
        %p221 = pneg %p119
        %p222 = pneg %p116
        %p223 = pneg %p145
        %p224 = pneg %p142
        %s225 = sand.u32 %s132, 1
        %s226 = scalar_lea.sflag [#allocation5], %s225
        %s227 = sand.u32 %s132, 1
        %s228 = smul.addr %s227, 7
        %s229 = scalar_lea.vmem [#allocation6], %s228
        %v230 = vld [vmem:[%s205] sm:$0xf]
        %v231 = vld [vmem:[%s205 + $0x4] sm:$0xf]
        %v232 = vld [vmem:[%s205 + $0x8] sm:$0xf]
        %v233 = vld [vmem:[%s205 + $0xc] sm:$0xf]
        %v234 = vld [vmem:[%s205 + $0x10] sm:$0xf]
        %v235 = vld [vmem:[%s205 + $0x14] sm:$0xf]
        %v236 = vld [vmem:[%s205 + $0x18] sm:$0xf]
        %v237 = vld [vmem:[%s205 + $0x1c] sm:$0xf]
        %v238 = vunpack.c.l.bf16 %v230
        %v239 = vunpack.c.l.bf16 %v231
        %v240 = vunpack.c.l.bf16 %v232
        %v241 = vunpack.c.l.bf16 %v233
        %v242 = vunpack.c.l.bf16 %v234
        %v243 = vunpack.c.l.bf16 %v235
        %v244 = vunpack.c.l.bf16 %v236
        %v245 = vunpack.c.l.bf16 %v237
        %vm246 = vcmask 130048
        %v247 = vsel %vm246, %v238, 0.0
        %248 = vadd.xlane.f32.xlu0 %v247
        %v249 = vpop.xlane.xlu0 %248
        %v250 = vsel %vm246, %v239, 0.0
        %251 = vadd.xlane.f32.xlu0 %v250
        %v252 = vpop.xlane.xlu0 %251
        %v253 = vsel %vm246, %v240, 0.0
        %254 = vadd.xlane.f32.xlu0 %v253
        %v255 = vpop.xlane.xlu0 %254
        %v256 = vsel %vm246, %v241, 0.0
        %257 = vadd.xlane.f32.xlu0 %v256
        %v258 = vpop.xlane.xlu0 %257
        %v259 = vsel %vm246, %v242, 0.0
        %260 = vadd.xlane.f32.xlu0 %v259
        %v261 = vpop.xlane.xlu0 %260
        %v262 = vsel %vm246, %v243, 0.0
        %263 = vadd.xlane.f32.xlu0 %v262
        %v264 = vpop.xlane.xlu0 %263
        %v265 = vsel %vm246, %v244, 0.0
        %266 = vadd.xlane.f32.xlu0 %v265
        %v267 = vpop.xlane.xlu0 %266
        %v268 = vsel %vm246, %v245, 0.0
        %269 = vadd.xlane.f32.xlu0 %v268
        %v270 = vpop.xlane.xlu0 %269
        %p271 = scmp.eq.s32.totalorder %s26, 0
        // Predicated region
        $region41: #{tpu_custom_call.1} parent=35 // pred_check
          %p272 = pneg %p271
        $region42: #{tpu_custom_call.1} parent=35 // pred_check_branch
          %274 = sbr.rel (%p272) target = $region44
        $region43: #{tpu_custom_call.1} parent=35 // pred_region
          %vm275 = vcmask 57344
          %276 = vst.msk [vmem:[#allocation2] sm:$0x1] %vm275, 0.0
          %277 = vst.msk [vmem:[#allocation2 + $0x1] sm:$0x1] %vm275, 0.0
          %278 = vst.msk [vmem:[#allocation2 + $0x2] sm:$0x1] %vm275, 0.0
          %279 = vst.msk [vmem:[#allocation2 + $0x3] sm:$0x1] %vm275, 0.0
          %280 = vst.msk [vmem:[#allocation2 + $0x4] sm:$0x1] %vm275, 0.0
          %281 = vst.msk [vmem:[#allocation2 + $0x5] sm:$0x1] %vm275, 0.0
          %282 = vst.msk [vmem:[#allocation2 + $0x6] sm:$0x1] %vm275, 0.0
          %283 = vst.msk [vmem:[#allocation2 + $0x7] sm:$0x1] %vm275, 0.0
        $region44: #{tpu_custom_call.1} parent=35 // pred_fallthru
          _
        %v284 = vld [vmem:[#allocation2] sm:$0x1]
        %v285 = vld [vmem:[#allocation2 + $0x1] sm:$0x1]
        %v286 = vld [vmem:[#allocation2 + $0x2] sm:$0x1]
        %v287 = vld [vmem:[#allocation2 + $0x3] sm:$0x1]
        %v288 = vld [vmem:[#allocation2 + $0x4] sm:$0x1]
        %v289 = vld [vmem:[#allocation2 + $0x5] sm:$0x1]
        %v290 = vld [vmem:[#allocation2 + $0x6] sm:$0x1]
        %v291 = vld [vmem:[#allocation2 + $0x7] sm:$0x1]
        %v300 = vlaneseq
        %v301 = vshrl.u32 %v300, 7
        %v302 = vsub.s32 0, %v301
        %v303 = vrot.slane %v249, %v302
        %v304 = vlaneseq
        %v305 = vshrl.u32 %v304, 7
        %v306 = vsub.s32 1, %v305
        %v307 = vrot.slane %v249, %v306
        %v308 = vlaneseq
        %v309 = vshrl.u32 %v308, 7
        %v310 = vsub.s32 2, %v309
        %v311 = vrot.slane %v249, %v310
        %v312 = vlaneseq
        %v313 = vshrl.u32 %v312, 7
        %v314 = vsub.s32 3, %v313
        %v315 = vrot.slane %v249, %v314
        %v316 = vlaneseq
        %v317 = vshrl.u32 %v316, 7
        %v318 = vsub.s32 4, %v317
        %v319 = vrot.slane %v249, %v318
        %v320 = vlaneseq
        %v321 = vshrl.u32 %v320, 7
        %v322 = vsub.s32 5, %v321
        %v323 = vrot.slane %v249, %v322
        %v324 = vlaneseq
        %v325 = vshrl.u32 %v324, 7
        %v326 = vsub.s32 6, %v325
        %v327 = vrot.slane %v249, %v326
        %v328 = vlaneseq
        %v329 = vshrl.u32 %v328, 7
        %v330 = vsub.s32 7, %v329
        %v331 = vrot.slane %v249, %v330
        %v332 = vlaneseq
        %v333 = vshrl.u32 %v332, 7
        %v334 = vsub.s32 0, %v333
        %v335 = vrot.slane %v252, %v334
        %v336 = vlaneseq
        %v337 = vshrl.u32 %v336, 7
        %v338 = vsub.s32 1, %v337
        %v339 = vrot.slane %v252, %v338
        %v340 = vlaneseq
        %v341 = vshrl.u32 %v340, 7
        %v342 = vsub.s32 2, %v341
        %v343 = vrot.slane %v252, %v342
        %v344 = vlaneseq
        %v345 = vshrl.u32 %v344, 7
        %v346 = vsub.s32 3, %v345
        %v347 = vrot.slane %v252, %v346
        %v348 = vlaneseq
        %v349 = vshrl.u32 %v348, 7
        %v350 = vsub.s32 4, %v349
        %v351 = vrot.slane %v252, %v350
        %v352 = vlaneseq
        %v353 = vshrl.u32 %v352, 7
        %v354 = vsub.s32 5, %v353
        %v355 = vrot.slane %v252, %v354
        %v356 = vlaneseq
        %v357 = vshrl.u32 %v356, 7
        %v358 = vsub.s32 6, %v357
        %v359 = vrot.slane %v252, %v358
        %v360 = vlaneseq
        %v361 = vshrl.u32 %v360, 7
        %v362 = vsub.s32 7, %v361
        %v363 = vrot.slane %v252, %v362
        %v364 = vlaneseq
        %v365 = vshrl.u32 %v364, 7
        %v366 = vsub.s32 0, %v365
        %v367 = vrot.slane %v255, %v366
        %v368 = vlaneseq
        %v369 = vshrl.u32 %v368, 7
        %v370 = vsub.s32 1, %v369
        %v371 = vrot.slane %v255, %v370
        %v372 = vlaneseq
        %v373 = vshrl.u32 %v372, 7
        %v374 = vsub.s32 2, %v373
        %v375 = vrot.slane %v255, %v374
        %v376 = vlaneseq
        %v377 = vshrl.u32 %v376, 7
        %v378 = vsub.s32 3, %v377
        %v379 = vrot.slane %v255, %v378
        %v380 = vlaneseq
        %v381 = vshrl.u32 %v380, 7
        %v382 = vsub.s32 4, %v381
        %v383 = vrot.slane %v255, %v382
        %v384 = vlaneseq
        %v385 = vshrl.u32 %v384, 7
        %v386 = vsub.s32 5, %v385
        %v387 = vrot.slane %v255, %v386
        %v388 = vlaneseq
        %v389 = vshrl.u32 %v388, 7
        %v390 = vsub.s32 6, %v389
        %v391 = vrot.slane %v255, %v390
        %v392 = vlaneseq
        %v393 = vshrl.u32 %v392, 7
        %v394 = vsub.s32 7, %v393
        %v395 = vrot.slane %v255, %v394
        %v396 = vlaneseq
        %v397 = vshrl.u32 %v396, 7
        %v398 = vsub.s32 0, %v397
        %v399 = vrot.slane %v258, %v398
        %v400 = vlaneseq
        %v401 = vshrl.u32 %v400, 7
        %v402 = vsub.s32 1, %v401
        %v403 = vrot.slane %v258, %v402
        %v404 = vlaneseq
        %v405 = vshrl.u32 %v404, 7
        %v406 = vsub.s32 2, %v405
        %v407 = vrot.slane %v258, %v406
        %v408 = vlaneseq
        %v409 = vshrl.u32 %v408, 7
        %v410 = vsub.s32 3, %v409
        %v411 = vrot.slane %v258, %v410
        %v412 = vlaneseq
        %v413 = vshrl.u32 %v412, 7
        %v414 = vsub.s32 4, %v413
        %v415 = vrot.slane %v258, %v414
        %v416 = vlaneseq
        %v417 = vshrl.u32 %v416, 7
        %v418 = vsub.s32 5, %v417
        %v419 = vrot.slane %v258, %v418
        %v420 = vlaneseq
        %v421 = vshrl.u32 %v420, 7
        %v422 = vsub.s32 6, %v421
        %v423 = vrot.slane %v258, %v422
        %v424 = vlaneseq
        %v425 = vshrl.u32 %v424, 7
        %v426 = vsub.s32 7, %v425
        %v427 = vrot.slane %v258, %v426
        %v428 = vlaneseq
        %v429 = vshrl.u32 %v428, 7
        %v430 = vsub.s32 0, %v429
        %v431 = vrot.slane %v261, %v430
        %v432 = vlaneseq
        %v433 = vshrl.u32 %v432, 7
        %v434 = vsub.s32 1, %v433
        %v435 = vrot.slane %v261, %v434
        %v436 = vlaneseq
        %v437 = vshrl.u32 %v436, 7
        %v438 = vsub.s32 2, %v437
        %v439 = vrot.slane %v261, %v438
        %v440 = vlaneseq
        %v441 = vshrl.u32 %v440, 7
        %v442 = vsub.s32 3, %v441
        %v443 = vrot.slane %v261, %v442
        %v444 = vlaneseq
        %v445 = vshrl.u32 %v444, 7
        %v446 = vsub.s32 4, %v445
        %v447 = vrot.slane %v261, %v446
        %v448 = vlaneseq
        %v449 = vshrl.u32 %v448, 7
        %v450 = vsub.s32 5, %v449
        %v451 = vrot.slane %v261, %v450
        %v452 = vlaneseq
        %v453 = vshrl.u32 %v452, 7
        %v454 = vsub.s32 6, %v453
        %v455 = vrot.slane %v261, %v454
        %v456 = vlaneseq
        %v457 = vshrl.u32 %v456, 7
        %v458 = vsub.s32 7, %v457
        %v459 = vrot.slane %v261, %v458
        %v460 = vlaneseq
        %v461 = vshrl.u32 %v460, 7
        %v462 = vsub.s32 0, %v461
        %v463 = vrot.slane %v264, %v462
        %v464 = vlaneseq
        %v465 = vshrl.u32 %v464, 7
        %v466 = vsub.s32 1, %v465
        %v467 = vrot.slane %v264, %v466
        %v468 = vlaneseq
        %v469 = vshrl.u32 %v468, 7
        %v470 = vsub.s32 2, %v469
        %v471 = vrot.slane %v264, %v470
        %v472 = vlaneseq
        %v473 = vshrl.u32 %v472, 7
        %v474 = vsub.s32 3, %v473
        %v475 = vrot.slane %v264, %v474
        %v476 = vlaneseq
        %v477 = vshrl.u32 %v476, 7
        %v478 = vsub.s32 4, %v477
        %v479 = vrot.slane %v264, %v478
        %v480 = vlaneseq
        %v481 = vshrl.u32 %v480, 7
        %v482 = vsub.s32 5, %v481
        %v483 = vrot.slane %v264, %v482
        %v484 = vlaneseq
        %v485 = vshrl.u32 %v484, 7
        %v486 = vsub.s32 6, %v485
        %v487 = vrot.slane %v264, %v486
        %v488 = vlaneseq
        %v489 = vshrl.u32 %v488, 7
        %v490 = vsub.s32 7, %v489
        %v491 = vrot.slane %v264, %v490
        %v492 = vlaneseq
        %v493 = vshrl.u32 %v492, 7
        %v494 = vsub.s32 0, %v493
        %v495 = vrot.slane %v267, %v494
        %v496 = vlaneseq
        %v497 = vshrl.u32 %v496, 7
        %v498 = vsub.s32 1, %v497
        %v499 = vrot.slane %v267, %v498
        %v500 = vlaneseq
        %v501 = vshrl.u32 %v500, 7
        %v502 = vsub.s32 2, %v501
        %v503 = vrot.slane %v267, %v502
        %v504 = vlaneseq
        %v505 = vshrl.u32 %v504, 7
        %v506 = vsub.s32 3, %v505
        %v507 = vrot.slane %v267, %v506
        %v508 = vlaneseq
        %v509 = vshrl.u32 %v508, 7
        %v510 = vsub.s32 4, %v509
        %v511 = vrot.slane %v267, %v510
        %v512 = vlaneseq
        %v513 = vshrl.u32 %v512, 7
        %v514 = vsub.s32 5, %v513
        %v515 = vrot.slane %v267, %v514
        %v516 = vlaneseq
        %v517 = vshrl.u32 %v516, 7
        %v518 = vsub.s32 6, %v517
        %v519 = vrot.slane %v267, %v518
        %v520 = vlaneseq
        %v521 = vshrl.u32 %v520, 7
        %v522 = vsub.s32 7, %v521
        %v523 = vrot.slane %v267, %v522
        %v524 = vlaneseq
        %v525 = vshrl.u32 %v524, 7
        %v526 = vsub.s32 0, %v525
        %v527 = vrot.slane %v270, %v526
        %v528 = vlaneseq
        %v529 = vshrl.u32 %v528, 7
        %v530 = vsub.s32 1, %v529
        %v531 = vrot.slane %v270, %v530
        %v532 = vlaneseq
        %v533 = vshrl.u32 %v532, 7
        %v534 = vsub.s32 2, %v533
        %v535 = vrot.slane %v270, %v534
        %v536 = vlaneseq
        %v537 = vshrl.u32 %v536, 7
        %v538 = vsub.s32 3, %v537
        %v539 = vrot.slane %v270, %v538
        %v540 = vlaneseq
        %v541 = vshrl.u32 %v540, 7
        %v542 = vsub.s32 4, %v541
        %v543 = vrot.slane %v270, %v542
        %v544 = vlaneseq
        %v545 = vshrl.u32 %v544, 7
        %v546 = vsub.s32 5, %v545
        %v547 = vrot.slane %v270, %v546
        %v548 = vlaneseq
        %v549 = vshrl.u32 %v548, 7
        %v550 = vsub.s32 6, %v549
        %v551 = vrot.slane %v270, %v550
        %v552 = vlaneseq
        %v553 = vshrl.u32 %v552, 7
        %v554 = vsub.s32 7, %v553
        %v555 = vrot.slane %v270, %v554
        %v556 = vcombine.low %v303, %v307
        %v557 = vcombine.low %v311, %v315
        %v558 = vcombine.low %v319, %v323
        %v559 = vcombine.low %v327, %v331
        %v561 = vunpack.c.l.s4 1966171168
        %v562 = vunpack.c.0.s8 %v561
        %v563 = vlaneseq
        %v564 = vshrl.u32 %v563, 7
        %v565 = vsub.s32 %v562, %v564
        %v566 = vrot.slane %v556, %v565
        %v568 = vunpack.c.l.s4 1966171168
        %v569 = vunpack.c.0.s8 %v568
        %v570 = vlaneseq
        %v571 = vshrl.u32 %v570, 7
        %v572 = vsub.s32 %v569, %v571
        %v573 = vrot.slane %v557, %v572
        %v575 = vunpack.c.l.s4 1966171168
        %v576 = vunpack.c.0.s8 %v575
        %v577 = vlaneseq
        %v578 = vshrl.u32 %v577, 7
        %v579 = vsub.s32 %v576, %v578
        %v580 = vrot.slane %v558, %v579
        %v582 = vunpack.c.l.s4 1966171168
        %v583 = vunpack.c.0.s8 %v582
        %v584 = vlaneseq
        %v585 = vshrl.u32 %v584, 7
        %v586 = vsub.s32 %v583, %v585
        %v587 = vrot.slane %v559, %v586
        %v588 = vcombine.low %v566, %v573
        %v589 = vcombine.low %v580, %v587
        %v591 = vunpack.c.l.s4 1966171168
        %v592 = vunpack.c.0.s8 %v591
        %v593 = vlaneseq
        %v594 = vshrl.u32 %v593, 7
        %v595 = vsub.s32 %v592, %v594
        %v596 = vrot.slane %v588, %v595
        %v598 = vunpack.c.l.s4 1966171168
        %v599 = vunpack.c.0.s8 %v598
        %v600 = vlaneseq
        %v601 = vshrl.u32 %v600, 7
        %v602 = vsub.s32 %v599, %v601
        %v603 = vrot.slane %v589, %v602
        %v604 = vcombine.low %v596, %v603
        %v605 = vcombine.low %v335, %v339
        %v606 = vcombine.low %v343, %v347
        %v607 = vcombine.low %v351, %v355
        %v608 = vcombine.low %v359, %v363
        %v610 = vunpack.c.l.s4 1966171168
        %v611 = vunpack.c.0.s8 %v610
        %v612 = vlaneseq
        %v613 = vshrl.u32 %v612, 7
        %v614 = vsub.s32 %v611, %v613
        %v615 = vrot.slane %v605, %v614
        %v617 = vunpack.c.l.s4 1966171168
        %v618 = vunpack.c.0.s8 %v617
        %v619 = vlaneseq
        %v620 = vshrl.u32 %v619, 7
        %v621 = vsub.s32 %v618, %v620
        %v622 = vrot.slane %v606, %v621
        %v624 = vunpack.c.l.s4 1966171168
        %v625 = vunpack.c.0.s8 %v624
        %v626 = vlaneseq
        %v627 = vshrl.u32 %v626, 7
        %v628 = vsub.s32 %v625, %v627
        %v629 = vrot.slane %v607, %v628
        %v631 = vunpack.c.l.s4 1966171168
        %v632 = vunpack.c.0.s8 %v631
        %v633 = vlaneseq
        %v634 = vshrl.u32 %v633, 7
        %v635 = vsub.s32 %v632, %v634
        %v636 = vrot.slane %v608, %v635
        %v637 = vcombine.low %v615, %v622
        %v638 = vcombine.low %v629, %v636
        %v640 = vunpack.c.l.s4 1966171168
        %v641 = vunpack.c.0.s8 %v640
        %v642 = vlaneseq
        %v643 = vshrl.u32 %v642, 7
        %v644 = vsub.s32 %v641, %v643
        %v645 = vrot.slane %v637, %v644
        %v647 = vunpack.c.l.s4 1966171168
        %v648 = vunpack.c.0.s8 %v647
        %v649 = vlaneseq
        %v650 = vshrl.u32 %v649, 7
        %v651 = vsub.s32 %v648, %v650
        %v652 = vrot.slane %v638, %v651
        %v653 = vcombine.low %v645, %v652
        %v654 = vcombine.low %v367, %v371
        %v655 = vcombine.low %v375, %v379
        %v656 = vcombine.low %v383, %v387
        %v657 = vcombine.low %v391, %v395
        %v659 = vunpack.c.l.s4 1966171168
        %v660 = vunpack.c.0.s8 %v659
        %v661 = vlaneseq
        %v662 = vshrl.u32 %v661, 7
        %v663 = vsub.s32 %v660, %v662
        %v664 = vrot.slane %v654, %v663
        %v666 = vunpack.c.l.s4 1966171168
        %v667 = vunpack.c.0.s8 %v666
        %v668 = vlaneseq
        %v669 = vshrl.u32 %v668, 7
        %v670 = vsub.s32 %v667, %v669
        %v671 = vrot.slane %v655, %v670
        %v673 = vunpack.c.l.s4 1966171168
        %v674 = vunpack.c.0.s8 %v673
        %v675 = vlaneseq
        %v676 = vshrl.u32 %v675, 7
        %v677 = vsub.s32 %v674, %v676
        %v678 = vrot.slane %v656, %v677
        %v680 = vunpack.c.l.s4 1966171168
        %v681 = vunpack.c.0.s8 %v680
        %v682 = vlaneseq
        %v683 = vshrl.u32 %v682, 7
        %v684 = vsub.s32 %v681, %v683
        %v685 = vrot.slane %v657, %v684
        %v686 = vcombine.low %v664, %v671
        %v687 = vcombine.low %v678, %v685
        %v689 = vunpack.c.l.s4 1966171168
        %v690 = vunpack.c.0.s8 %v689
        %v691 = vlaneseq
        %v692 = vshrl.u32 %v691, 7
        %v693 = vsub.s32 %v690, %v692
        %v694 = vrot.slane %v686, %v693
        %v696 = vunpack.c.l.s4 1966171168
        %v697 = vunpack.c.0.s8 %v696
        %v698 = vlaneseq
        %v699 = vshrl.u32 %v698, 7
        %v700 = vsub.s32 %v697, %v699
        %v701 = vrot.slane %v687, %v700
        %v702 = vcombine.low %v694, %v701
        %v703 = vcombine.low %v399, %v403
        %v704 = vcombine.low %v407, %v411
        %v705 = vcombine.low %v415, %v419
        %v706 = vcombine.low %v423, %v427
        %v708 = vunpack.c.l.s4 1966171168
        %v709 = vunpack.c.0.s8 %v708
        %v710 = vlaneseq
        %v711 = vshrl.u32 %v710, 7
        %v712 = vsub.s32 %v709, %v711
        %v713 = vrot.slane %v703, %v712
        %v715 = vunpack.c.l.s4 1966171168
        %v716 = vunpack.c.0.s8 %v715
        %v717 = vlaneseq
        %v718 = vshrl.u32 %v717, 7
        %v719 = vsub.s32 %v716, %v718
        %v720 = vrot.slane %v704, %v719
        %v722 = vunpack.c.l.s4 1966171168
        %v723 = vunpack.c.0.s8 %v722
        %v724 = vlaneseq
        %v725 = vshrl.u32 %v724, 7
        %v726 = vsub.s32 %v723, %v725
        %v727 = vrot.slane %v705, %v726
        %v729 = vunpack.c.l.s4 1966171168
        %v730 = vunpack.c.0.s8 %v729
        %v731 = vlaneseq
        %v732 = vshrl.u32 %v731, 7
        %v733 = vsub.s32 %v730, %v732
        %v734 = vrot.slane %v706, %v733
        %v735 = vcombine.low %v713, %v720
        %v736 = vcombine.low %v727, %v734
        %v738 = vunpack.c.l.s4 1966171168
        %v739 = vunpack.c.0.s8 %v738
        %v740 = vlaneseq
        %v741 = vshrl.u32 %v740, 7
        %v742 = vsub.s32 %v739, %v741
        %v743 = vrot.slane %v735, %v742
        %v745 = vunpack.c.l.s4 1966171168
        %v746 = vunpack.c.0.s8 %v745
        %v747 = vlaneseq
        %v748 = vshrl.u32 %v747, 7
        %v749 = vsub.s32 %v746, %v748
        %v750 = vrot.slane %v736, %v749
        %v751 = vcombine.low %v743, %v750
        %v752 = vcombine.low %v431, %v435
        %v753 = vcombine.low %v439, %v443
        %v754 = vcombine.low %v447, %v451
        %v755 = vcombine.low %v455, %v459
        %v757 = vunpack.c.l.s4 1966171168
        %v758 = vunpack.c.0.s8 %v757
        %v759 = vlaneseq
        %v760 = vshrl.u32 %v759, 7
        %v761 = vsub.s32 %v758, %v760
        %v762 = vrot.slane %v752, %v761
        %v764 = vunpack.c.l.s4 1966171168
        %v765 = vunpack.c.0.s8 %v764
        %v766 = vlaneseq
        %v767 = vshrl.u32 %v766, 7
        %v768 = vsub.s32 %v765, %v767
        %v769 = vrot.slane %v753, %v768
        %v771 = vunpack.c.l.s4 1966171168
        %v772 = vunpack.c.0.s8 %v771
        %v773 = vlaneseq
        %v774 = vshrl.u32 %v773, 7
        %v775 = vsub.s32 %v772, %v774
        %v776 = vrot.slane %v754, %v775
        %v778 = vunpack.c.l.s4 1966171168
        %v779 = vunpack.c.0.s8 %v778
        %v780 = vlaneseq
        %v781 = vshrl.u32 %v780, 7
        %v782 = vsub.s32 %v779, %v781
        %v783 = vrot.slane %v755, %v782
        %v784 = vcombine.low %v762, %v769
        %v785 = vcombine.low %v776, %v783
        %v787 = vunpack.c.l.s4 1966171168
        %v788 = vunpack.c.0.s8 %v787
        %v789 = vlaneseq
        %v790 = vshrl.u32 %v789, 7
        %v791 = vsub.s32 %v788, %v790
        %v792 = vrot.slane %v784, %v791
        %v794 = vunpack.c.l.s4 1966171168
        %v795 = vunpack.c.0.s8 %v794
        %v796 = vlaneseq
        %v797 = vshrl.u32 %v796, 7
        %v798 = vsub.s32 %v795, %v797
        %v799 = vrot.slane %v785, %v798
        %v800 = vcombine.low %v792, %v799
        %v801 = vcombine.low %v463, %v467
        %v802 = vcombine.low %v471, %v475
        %v803 = vcombine.low %v479, %v483
        %v804 = vcombine.low %v487, %v491
        %v806 = vunpack.c.l.s4 1966171168
        %v807 = vunpack.c.0.s8 %v806
        %v808 = vlaneseq
        %v809 = vshrl.u32 %v808, 7
        %v810 = vsub.s32 %v807, %v809
        %v811 = vrot.slane %v801, %v810
        %v813 = vunpack.c.l.s4 1966171168
        %v814 = vunpack.c.0.s8 %v813
        %v815 = vlaneseq
        %v816 = vshrl.u32 %v815, 7
        %v817 = vsub.s32 %v814, %v816
        %v818 = vrot.slane %v802, %v817
        %v820 = vunpack.c.l.s4 1966171168
        %v821 = vunpack.c.0.s8 %v820
        %v822 = vlaneseq
        %v823 = vshrl.u32 %v822, 7
        %v824 = vsub.s32 %v821, %v823
        %v825 = vrot.slane %v803, %v824
        %v827 = vunpack.c.l.s4 1966171168
        %v828 = vunpack.c.0.s8 %v827
        %v829 = vlaneseq
        %v830 = vshrl.u32 %v829, 7
        %v831 = vsub.s32 %v828, %v830
        %v832 = vrot.slane %v804, %v831
        %v833 = vcombine.low %v811, %v818
        %v834 = vcombine.low %v825, %v832
        %v836 = vunpack.c.l.s4 1966171168
        %v837 = vunpack.c.0.s8 %v836
        %v838 = vlaneseq
        %v839 = vshrl.u32 %v838, 7
        %v840 = vsub.s32 %v837, %v839
        %v841 = vrot.slane %v833, %v840
        %v843 = vunpack.c.l.s4 1966171168
        %v844 = vunpack.c.0.s8 %v843
        %v845 = vlaneseq
        %v846 = vshrl.u32 %v845, 7
        %v847 = vsub.s32 %v844, %v846
        %v848 = vrot.slane %v834, %v847
        %v849 = vcombine.low %v841, %v848
        %v850 = vcombine.low %v495, %v499
        %v851 = vcombine.low %v503, %v507
        %v852 = vcombine.low %v511, %v515
        %v853 = vcombine.low %v519, %v523
        %v855 = vunpack.c.l.s4 1966171168
        %v856 = vunpack.c.0.s8 %v855
        %v857 = vlaneseq
        %v858 = vshrl.u32 %v857, 7
        %v859 = vsub.s32 %v856, %v858
        %v860 = vrot.slane %v850, %v859
        %v862 = vunpack.c.l.s4 1966171168
        %v863 = vunpack.c.0.s8 %v862
        %v864 = vlaneseq
        %v865 = vshrl.u32 %v864, 7
        %v866 = vsub.s32 %v863, %v865
        %v867 = vrot.slane %v851, %v866
        %v869 = vunpack.c.l.s4 1966171168
        %v870 = vunpack.c.0.s8 %v869
        %v871 = vlaneseq
        %v872 = vshrl.u32 %v871, 7
        %v873 = vsub.s32 %v870, %v872
        %v874 = vrot.slane %v852, %v873
        %v876 = vunpack.c.l.s4 1966171168
        %v877 = vunpack.c.0.s8 %v876
        %v878 = vlaneseq
        %v879 = vshrl.u32 %v878, 7
        %v880 = vsub.s32 %v877, %v879
        %v881 = vrot.slane %v853, %v880
        %v882 = vcombine.low %v860, %v867
        %v883 = vcombine.low %v874, %v881
        %v885 = vunpack.c.l.s4 1966171168
        %v886 = vunpack.c.0.s8 %v885
        %v887 = vlaneseq
        %v888 = vshrl.u32 %v887, 7
        %v889 = vsub.s32 %v886, %v888
        %v890 = vrot.slane %v882, %v889
        %v892 = vunpack.c.l.s4 1966171168
        %v893 = vunpack.c.0.s8 %v892
        %v894 = vlaneseq
        %v895 = vshrl.u32 %v894, 7
        %v896 = vsub.s32 %v893, %v895
        %v897 = vrot.slane %v883, %v896
        %v898 = vcombine.low %v890, %v897
        %v899 = vcombine.low %v527, %v531
        %v900 = vcombine.low %v535, %v539
        %v901 = vcombine.low %v543, %v547
        %v902 = vcombine.low %v551, %v555
        %v904 = vunpack.c.l.s4 1966171168
        %v905 = vunpack.c.0.s8 %v904
        %v906 = vlaneseq
        %v907 = vshrl.u32 %v906, 7
        %v908 = vsub.s32 %v905, %v907
        %v909 = vrot.slane %v899, %v908
        %v911 = vunpack.c.l.s4 1966171168
        %v912 = vunpack.c.0.s8 %v911
        %v913 = vlaneseq
        %v914 = vshrl.u32 %v913, 7
        %v915 = vsub.s32 %v912, %v914
        %v916 = vrot.slane %v900, %v915
        %v918 = vunpack.c.l.s4 1966171168
        %v919 = vunpack.c.0.s8 %v918
        %v920 = vlaneseq
        %v921 = vshrl.u32 %v920, 7
        %v922 = vsub.s32 %v919, %v921
        %v923 = vrot.slane %v901, %v922
        %v925 = vunpack.c.l.s4 1966171168
        %v926 = vunpack.c.0.s8 %v925
        %v927 = vlaneseq
        %v928 = vshrl.u32 %v927, 7
        %v929 = vsub.s32 %v926, %v928
        %v930 = vrot.slane %v902, %v929
        %v931 = vcombine.low %v909, %v916
        %v932 = vcombine.low %v923, %v930
        %v934 = vunpack.c.l.s4 1966171168
        %v935 = vunpack.c.0.s8 %v934
        %v936 = vlaneseq
        %v937 = vshrl.u32 %v936, 7
        %v938 = vsub.s32 %v935, %v937
        %v939 = vrot.slane %v931, %v938
        %v941 = vunpack.c.l.s4 1966171168
        %v942 = vunpack.c.0.s8 %v941
        %v943 = vlaneseq
        %v944 = vshrl.u32 %v943, 7
        %v945 = vsub.s32 %v942, %v944
        %v946 = vrot.slane %v932, %v945
        %v947 = vcombine.low %v939, %v946
        %948 = vset.pattern.permute.xlu0 0
        %949 = vperm.xlu0 %948, %v604
        %v950 = vpop.permute.xlu0 %949
        %951 = vset.pattern.permute.xlu0 0
        %952 = vperm.xlu0 %951, %v653
        %v953 = vpop.permute.xlu0 %952
        %954 = vset.pattern.permute.xlu0 0
        %955 = vperm.xlu0 %954, %v702
        %v956 = vpop.permute.xlu0 %955
        %957 = vset.pattern.permute.xlu0 0
        %958 = vperm.xlu0 %957, %v751
        %v959 = vpop.permute.xlu0 %958
        %960 = vset.pattern.permute.xlu0 0
        %961 = vperm.xlu0 %960, %v800
        %v962 = vpop.permute.xlu0 %961
        %963 = vset.pattern.permute.xlu0 0
        %964 = vperm.xlu0 %963, %v849
        %v965 = vpop.permute.xlu0 %964
        %966 = vset.pattern.permute.xlu0 0
        %967 = vperm.xlu0 %966, %v898
        %v968 = vpop.permute.xlu0 %967
        %969 = vset.pattern.permute.xlu0 0
        %970 = vperm.xlu0 %969, %v947
        %v971 = vpop.permute.xlu0 %970
        %v972 = vlaneseq
        %v973 = vand.u32 %v972, 127
        %v974 = vlaneseq
        %v975 = vshrl.u32 %v974, 7
        %v976 = vsub.s32 %v973, %v975
        %v977 = vrot.slane %v950, %v976
        %v978 = vlaneseq
        %v979 = vshrl.u32 %v978, 7
        %v980 = vsub.s32 %v973, %v979
        %v981 = vrot.slane %v953, %v980
        %v982 = vlaneseq
        %v983 = vshrl.u32 %v982, 7
        %v984 = vsub.s32 %v973, %v983
        %v985 = vrot.slane %v956, %v984
        %v986 = vlaneseq
        %v987 = vshrl.u32 %v986, 7
        %v988 = vsub.s32 %v973, %v987
        %v989 = vrot.slane %v959, %v988
        %v990 = vlaneseq
        %v991 = vshrl.u32 %v990, 7
        %v992 = vsub.s32 %v973, %v991
        %v993 = vrot.slane %v962, %v992
        %v994 = vlaneseq
        %v995 = vshrl.u32 %v994, 7
        %v996 = vsub.s32 %v973, %v995
        %v997 = vrot.slane %v965, %v996
        %v998 = vlaneseq
        %v999 = vshrl.u32 %v998, 7
        %v1000 = vsub.s32 %v973, %v999
        %v1001 = vrot.slane %v968, %v1000
        %v1002 = vlaneseq
        %v1003 = vshrl.u32 %v1002, 7
        %v1004 = vsub.s32 %v973, %v1003
        %v1005 = vrot.slane %v971, %v1004
        %v1007 = vunpack.c.l.s4 1966171168
        %v1008 = vunpack.c.0.s8 %v1007
        %v1009 = vlaneseq
        %v1010 = vshrl.u32 %v1009, 7
        %v1011 = vsub.s32 %v1008, %v1010
        %v1012 = vrot.slane %v977, %v1011
        %v1014 = vunpack.c.l.s4 1966171168
        %v1015 = vunpack.c.0.s8 %v1014
        %v1016 = vlaneseq
        %v1017 = vshrl.u32 %v1016, 7
        %v1018 = vsub.s32 %v1015, %v1017
        %v1019 = vrot.slane %v1012, %v1018
        %v1021 = vunpack.c.l.s4 1966171168
        %v1022 = vunpack.c.0.s8 %v1021
        %v1023 = vlaneseq
        %v1024 = vshrl.u32 %v1023, 7
        %v1025 = vsub.s32 %v1022, %v1024
        %v1026 = vrot.slane %v981, %v1025
        %v1028 = vunpack.c.l.s4 1966171168
        %v1029 = vunpack.c.0.s8 %v1028
        %v1030 = vlaneseq
        %v1031 = vshrl.u32 %v1030, 7
        %v1032 = vsub.s32 %v1029, %v1031
        %v1033 = vrot.slane %v1026, %v1032
        %v1035 = vunpack.c.l.s4 1966171168
        %v1036 = vunpack.c.0.s8 %v1035
        %v1037 = vlaneseq
        %v1038 = vshrl.u32 %v1037, 7
        %v1039 = vsub.s32 %v1036, %v1038
        %v1040 = vrot.slane %v985, %v1039
        %v1042 = vunpack.c.l.s4 1966171168
        %v1043 = vunpack.c.0.s8 %v1042
        %v1044 = vlaneseq
        %v1045 = vshrl.u32 %v1044, 7
        %v1046 = vsub.s32 %v1043, %v1045
        %v1047 = vrot.slane %v1040, %v1046
        %v1049 = vunpack.c.l.s4 1966171168
        %v1050 = vunpack.c.0.s8 %v1049
        %v1051 = vlaneseq
        %v1052 = vshrl.u32 %v1051, 7
        %v1053 = vsub.s32 %v1050, %v1052
        %v1054 = vrot.slane %v989, %v1053
        %v1056 = vunpack.c.l.s4 1966171168
        %v1057 = vunpack.c.0.s8 %v1056
        %v1058 = vlaneseq
        %v1059 = vshrl.u32 %v1058, 7
        %v1060 = vsub.s32 %v1057, %v1059
        %v1061 = vrot.slane %v1054, %v1060
        %v1063 = vunpack.c.l.s4 1966171168
        %v1064 = vunpack.c.0.s8 %v1063
        %v1065 = vlaneseq
        %v1066 = vshrl.u32 %v1065, 7
        %v1067 = vsub.s32 %v1064, %v1066
        %v1068 = vrot.slane %v993, %v1067
        %v1070 = vunpack.c.l.s4 1966171168
        %v1071 = vunpack.c.0.s8 %v1070
        %v1072 = vlaneseq
        %v1073 = vshrl.u32 %v1072, 7
        %v1074 = vsub.s32 %v1071, %v1073
        %v1075 = vrot.slane %v1068, %v1074
        %v1077 = vunpack.c.l.s4 1966171168
        %v1078 = vunpack.c.0.s8 %v1077
        %v1079 = vlaneseq
        %v1080 = vshrl.u32 %v1079, 7
        %v1081 = vsub.s32 %v1078, %v1080
        %v1082 = vrot.slane %v997, %v1081
        %v1084 = vunpack.c.l.s4 1966171168
        %v1085 = vunpack.c.0.s8 %v1084
        %v1086 = vlaneseq
        %v1087 = vshrl.u32 %v1086, 7
        %v1088 = vsub.s32 %v1085, %v1087
        %v1089 = vrot.slane %v1082, %v1088
        %v1091 = vunpack.c.l.s4 1966171168
        %v1092 = vunpack.c.0.s8 %v1091
        %v1093 = vlaneseq
        %v1094 = vshrl.u32 %v1093, 7
        %v1095 = vsub.s32 %v1092, %v1094
        %v1096 = vrot.slane %v1001, %v1095
        %v1098 = vunpack.c.l.s4 1966171168
        %v1099 = vunpack.c.0.s8 %v1098
        %v1100 = vlaneseq
        %v1101 = vshrl.u32 %v1100, 7
        %v1102 = vsub.s32 %v1099, %v1101
        %v1103 = vrot.slane %v1096, %v1102
        %v1105 = vunpack.c.l.s4 1966171168
        %v1106 = vunpack.c.0.s8 %v1105
        %v1107 = vlaneseq
        %v1108 = vshrl.u32 %v1107, 7
        %v1109 = vsub.s32 %v1106, %v1108
        %v1110 = vrot.slane %v1005, %v1109
        %v1112 = vunpack.c.l.s4 1966171168
        %v1113 = vunpack.c.0.s8 %v1112
        %v1114 = vlaneseq
        %v1115 = vshrl.u32 %v1114, 7
        %v1116 = vsub.s32 %v1113, %v1115
        %v1117 = vrot.slane %v1110, %v1116
        %v1126 = vadd.f32 %v284, %v1019
        %v1127 = vadd.f32 %v285, %v1033
        %v1128 = vadd.f32 %v286, %v1047
        %v1129 = vadd.f32 %v287, %v1061
        %v1130 = vadd.f32 %v288, %v1075
        %v1131 = vadd.f32 %v289, %v1089
        %v1132 = vadd.f32 %v290, %v1103
        %v1133 = vadd.f32 %v291, %v1117
        %vm1134 = vcmask 57344
        %1135 = vst.msk [vmem:[#allocation2] sm:$0x1] %vm1134, %v1126
        %1136 = vst.msk [vmem:[#allocation2 + $0x1] sm:$0x1] %vm1134, %v1127
        %1137 = vst.msk [vmem:[#allocation2 + $0x2] sm:$0x1] %vm1134, %v1128
        %1138 = vst.msk [vmem:[#allocation2 + $0x3] sm:$0x1] %vm1134, %v1129
        %1139 = vst.msk [vmem:[#allocation2 + $0x4] sm:$0x1] %vm1134, %v1130
        %1140 = vst.msk [vmem:[#allocation2 + $0x5] sm:$0x1] %vm1134, %v1131
        %1141 = vst.msk [vmem:[#allocation2 + $0x6] sm:$0x1] %vm1134, %v1132
        %1142 = vst.msk [vmem:[#allocation2 + $0x7] sm:$0x1] %vm1134, %v1133
        // Predicated region
        $region45: #{tpu_custom_call.1} parent=35 // pred_check
          %p1143 = pneg %p271
        $region46: #{tpu_custom_call.1} parent=35 // pred_check_branch
          %1145 = sbr.rel (%p1143) target = $region48
        $region47: #{tpu_custom_call.1} parent=35 // pred_region
          %v1146 = vld [vmem:[#allocation2] sm:$0x1]
          %v1147 = vld [vmem:[#allocation2 + $0x1] sm:$0x1]
          %v1148 = vld [vmem:[#allocation2 + $0x2] sm:$0x1]
          %v1149 = vld [vmem:[#allocation2 + $0x3] sm:$0x1]
          %v1150 = vld [vmem:[#allocation2 + $0x4] sm:$0x1]
          %v1151 = vld [vmem:[#allocation2 + $0x5] sm:$0x1]
          %v1152 = vld [vmem:[#allocation2 + $0x6] sm:$0x1]
          %v1153 = vld [vmem:[#allocation2 + $0x7] sm:$0x1]
          %v1154 = vmul.f32 %v1146, 0.0625
          %v1155 = vmul.f32 %v1147, 0.0625
          %v1156 = vmul.f32 %v1148, 0.0625
          %v1157 = vmul.f32 %v1149, 0.0625
          %v1158 = vmul.f32 %v1150, 0.0625
          %v1159 = vmul.f32 %v1151, 0.0625
          %v1160 = vmul.f32 %v1152, 0.0625
          %v1161 = vmul.f32 %v1153, 0.0625
          %1169 = vrot.lane.b32.xlu0 %v1154, 8
          %v1170 = vpop.permute.xlu0 %1169
          %1171 = vrot.lane.b32.xlu0 %v1155, 8
          %v1172 = vpop.permute.xlu0 %1171
          %1173 = vrot.lane.b32.xlu0 %v1156, 8
          %v1174 = vpop.permute.xlu0 %1173
          %1175 = vrot.lane.b32.xlu0 %v1157, 8
          %v1176 = vpop.permute.xlu0 %1175
          %1177 = vrot.lane.b32.xlu0 %v1158, 8
          %v1178 = vpop.permute.xlu0 %1177
          %1179 = vrot.lane.b32.xlu0 %v1159, 8
          %v1180 = vpop.permute.xlu0 %1179
          %1181 = vrot.lane.b32.xlu0 %v1160, 8
          %v1182 = vpop.permute.xlu0 %1181
          %1191 = vrot.lane.b32.xlu0 %v1155, 16
          %v1192 = vpop.permute.xlu0 %1191
          %1193 = vrot.lane.b32.xlu0 %v1156, 16
          %v1194 = vpop.permute.xlu0 %1193
          %1195 = vrot.lane.b32.xlu0 %v1157, 16
          %v1196 = vpop.permute.xlu0 %1195
          %1197 = vrot.lane.b32.xlu0 %v1158, 16
          %v1198 = vpop.permute.xlu0 %1197
          %1199 = vrot.lane.b32.xlu0 %v1159, 16
          %v1200 = vpop.permute.xlu0 %1199
          %1201 = vrot.lane.b32.xlu0 %v1160, 16
          %v1202 = vpop.permute.xlu0 %1201
          %1203 = vrot.lane.b32.xlu0 %v1161, 16
          %v1204 = vpop.permute.xlu0 %1203
          %1213 = vrot.lane.b32.xlu0 %v1156, 24
          %v1214 = vpop.permute.xlu0 %1213
          %1215 = vrot.lane.b32.xlu0 %v1157, 24
          %v1216 = vpop.permute.xlu0 %1215
          %1217 = vrot.lane.b32.xlu0 %v1158, 24
          %v1218 = vpop.permute.xlu0 %1217
          %1219 = vrot.lane.b32.xlu0 %v1159, 24
          %v1220 = vpop.permute.xlu0 %1219
          %1221 = vrot.lane.b32.xlu0 %v1160, 24
          %v1222 = vpop.permute.xlu0 %1221
          %1223 = vrot.lane.b32.xlu0 %v1161, 24
          %v1224 = vpop.permute.xlu0 %1223
          %1225 = vrot.lane.b32.xlu0 0.0, 24
          %v1226 = vpop.permute.xlu0 %1225
          %vm1234 = vcmask 64512
          %v1235 = vsel %vm1234, 0.0, %v1170
          %v1236 = vsel %vm1234, %v1154, %v1172
          %v1237 = vsel %vm1234, %v1155, %v1174
          %v1238 = vsel %vm1234, %v1156, %v1176
          %v1239 = vsel %vm1234, %v1157, %v1178
          %v1240 = vsel %vm1234, %v1158, %v1180
          %v1241 = vsel %vm1234, %v1159, %v1182
          %v1242 = vsel %vm246, %v1235, %v1192
          %v1243 = vsel %vm246, %v1236, %v1194
          %v1244 = vsel %vm246, %v1237, %v1196
          %v1245 = vsel %vm246, %v1238, %v1198
          %v1246 = vsel %vm246, %v1239, %v1200
          %v1247 = vsel %vm246, %v1240, %v1202
          %v1248 = vsel %vm246, %v1241, %v1204
          %vm1249 = vcmask 195584
          %v1250 = vsel %vm1249, %v1242, %v1214
          %v1251 = vsel %vm1249, %v1243, %v1216
          %v1252 = vsel %vm1249, %v1244, %v1218
          %v1253 = vsel %vm1249, %v1245, %v1220
          %v1254 = vsel %vm1249, %v1246, %v1222
          %v1255 = vsel %vm1249, %v1247, %v1224
          %v1256 = vsel %vm1249, %v1248, %v1226
          %v1257 = vld [vmem:[%s1] sm:$0xff]
          %v1258 = vld [vmem:[%s1 + $0x8] sm:$0xff]
          %v1259 = vld [vmem:[%s1 + $0x10] sm:$0xff]
          %v1260 = vld [vmem:[%s1 + $0x18] sm:$0xff]
          %v1261 = vld [vmem:[%s2] sm:$0x1]
          %v1263 = vlaneseq
          %v1264 = vshrl.u32 %v1263, 7
          %v1265 = vsub.s32 0, %v1264
          %v1266 = vrot.slane %v1261, %v1265
          %v1275 = vrot.slane %v1251, 7
          %vm1276 = vcmask 1041409
          %v1277 = vsel %vm1276, %v1275, %v1250
          %v1278 = vrot.slane %v1252, 6
          %vm1279 = vcmask 1042434
          %v1280 = vsel %vm1279, %v1278, %v1277
          %v1281 = vrot.slane %v1253, 5
          %vm1282 = vcmask 1043459
          %v1283 = vsel %vm1282, %v1281, %v1280
          %v1284 = vrot.slane %v1254, 4
          %vm1285 = vcmask 1044484
          %v1286 = vsel %vm1285, %v1284, %v1283
          %v1287 = vrot.slane %v1255, 3
          %vm1288 = vcmask 1045509
          %v1289 = vsel %vm1288, %v1287, %v1286
          %v1290 = vrot.slane %v1256, 2
          %vm1291 = vcmask 1046534
          %v1292 = vsel %vm1291, %v1290, %v1289
          %vm1293 = vcmask 261120
          %v1294 = vsel %vm1293, %v1292, 0
          %1296 = vmatprep.subr.mxu0 0.0
          %1297 = vmatpush1.msra.mxu0 %v1257
          %1298 = vmatprep.subr.mxu0 0.0
          %1299 = vmatpush1.msra.mxu0 %v1258
          %1300 = vmatprep.subr.mxu0 0.0
          %1301 = vmatpush1.msra.mxu0 %v1259
          %1302 = vmatprep.subr.mxu0 0.0
          %1303 = vmatpush1.msra.mxu0 %v1260
          %1304 = vmatprep.subr.mxu0 0.0
          %1305 = vmatpush1.msra.mxu0 0.0
          %1306 = vmatprep.subr.mxu0 0.0
          %1307 = vmatpush1.msra.mxu0 0.0
          %1308 = vmatprep.subr.mxu0 0.0
          %1309 = vmatpush1.msra.mxu0 0.0
          %1310 = vmatprep.subr.mxu0 0.0
          %1311 = vmatpush1.msra.mxu0 0.0
          %1312 = vmatprep.subr.mxu0 0.0
          %1313 = vmatpush1.msra.mxu0 0.0
          %1314 = vmatprep.subr.mxu0 0.0
          %1315 = vmatpush1.msra.mxu0 0.0
          %1316 = vmatprep.subr.mxu0 0.0
          %1317 = vmatpush1.msra.mxu0 0.0
          %1318 = vmatprep.subr.mxu0 0.0
          %1319 = vmatpush1.msra.mxu0 0.0
          %1320 = vmatprep.subr.mxu0 0.0
          %1321 = vmatpush1.msra.mxu0 0.0
          %1322 = vmatprep.subr.mxu0 0.0
          %1323 = vmatpush1.msra.mxu0 0.0
          %1324 = vmatprep.subr.mxu0 0.0
          %1325 = vmatpush1.msra.mxu0 0.0
          %1326 = vmatprep.subr.mxu0 0.0
          %1327 = vmatpush1.msra.mxu0 0.0
          %1328 = vmatprep.subr.mxu0 0.0
          %1329 = vmatpush1.msra.mxu0 0.0
          %1330 = vmatprep.subr.mxu0 0.0
          %1331 = vmatpush1.msra.mxu0 0.0
          %1332 = vmatprep.subr.mxu0 0.0
          %1333 = vmatpush1.msra.mxu0 0.0
          %1334 = vmatprep.subr.mxu0 0.0
          %1335 = vmatpush1.msra.mxu0 0.0
          %1336 = vmatprep.subr.mxu0 0.0
          %1337 = vmatpush1.msra.mxu0 0.0
          %1338 = vmatprep.subr.mxu0 0.0
          %1339 = vmatpush1.msra.mxu0 0.0
          %1340 = vmatprep.subr.mxu0 0.0
          %1341 = vmatpush1.msra.mxu0 0.0
          %1342 = vmatprep.subr.mxu0 0.0
          %1343 = vmatpush1.msra.mxu0 0.0
          %1344 = vmatprep.subr.mxu0 0.0
          %1345 = vmatpush1.msra.mxu0 0.0
          %1346 = vmatprep.subr.mxu0 0.0
          %1347 = vmatpush1.msra.mxu0 0.0
          %1348 = vmatprep.subr.mxu0 0.0
          %1349 = vmatpush1.msra.mxu0 0.0
          %1350 = vmatprep.subr.mxu0 0.0
          %1351 = vmatpush1.msra.mxu0 0.0
          %1352 = vmatprep.subr.mxu0 0.0
          %1353 = vmatpush1.msra.mxu0 0.0
          %1354 = vmatprep.subr.mxu0 0.0
          %1355 = vmatpush1.msra.mxu0 0.0
          %1356 = vmatprep.subr.mxu0 0.0
          %1357 = vmatpush1.msra.mxu0 0.0
          %1358 = vmatprep.subr.mxu0 0.0
          %1359 = vmatpush1.msra.mxu0 0.0
          %1360 = vmatprep.mubr.f32.mxu0 0.0
          %1361 = vmatmul.mubr.f32.gmra.mrb[0].mxu0 %v1294
          %v1362 = vpop.f32.mrb[0].mxu0
          %v1363 = vadd.f32 %v1266, %v1362
          %v1364 = vpop.f32.mrb[0].mxu0
          %1365 = vdwg.mxu0
          %v1366 = vmax.f32 %v1363, 0.0
          %v1367 = vld [vmem:[%s3] sm:$0xf]
          %vm1368 = vcmask 31744
          %v1370 = vsel %vm1368, %v1366, 0
          %vm1372 = vcmask 1043456
          %v1374 = vsel %vm1372, %v1367, 0
          %1376 = vmatprep.subr.mxu0 0.0
          %1377 = vmatpush1.msra.mxu0 %v1374
          %1378 = vmatprep.subr.mxu0 0.0
          %1379 = vmatpush1.msra.mxu0 0.0
          %1380 = vmatprep.subr.mxu0 0.0
          %1381 = vmatpush1.msra.mxu0 0.0
          %1382 = vmatprep.subr.mxu0 0.0
          %1383 = vmatpush1.msra.mxu0 0.0
          %1384 = vmatprep.subr.mxu0 0.0
          %1385 = vmatpush1.msra.mxu0 0.0
          %1386 = vmatprep.subr.mxu0 0.0
          %1387 = vmatpush1.msra.mxu0 0.0
          %1388 = vmatprep.subr.mxu0 0.0
          %1389 = vmatpush1.msra.mxu0 0.0
          %1390 = vmatprep.subr.mxu0 0.0
          %1391 = vmatpush1.msra.mxu0 0.0
          %1392 = vmatprep.subr.mxu0 0.0
          %1393 = vmatpush1.msra.mxu0 0.0
          %1394 = vmatprep.subr.mxu0 0.0
          %1395 = vmatpush1.msra.mxu0 0.0
          %1396 = vmatprep.subr.mxu0 0.0
          %1397 = vmatpush1.msra.mxu0 0.0
          %1398 = vmatprep.subr.mxu0 0.0
          %1399 = vmatpush1.msra.mxu0 0.0
          %1400 = vmatprep.subr.mxu0 0.0
          %1401 = vmatpush1.msra.mxu0 0.0
          %1402 = vmatprep.subr.mxu0 0.0
          %1403 = vmatpush1.msra.mxu0 0.0
          %1404 = vmatprep.subr.mxu0 0.0
          %1405 = vmatpush1.msra.mxu0 0.0
          %1406 = vmatprep.subr.mxu0 0.0
          %1407 = vmatpush1.msra.mxu0 0.0
          %1408 = vmatprep.subr.mxu0 0.0
          %1409 = vmatpush1.msra.mxu0 0.0
          %1410 = vmatprep.subr.mxu0 0.0
          %1411 = vmatpush1.msra.mxu0 0.0
          %1412 = vmatprep.subr.mxu0 0.0
          %1413 = vmatpush1.msra.mxu0 0.0
          %1414 = vmatprep.subr.mxu0 0.0
          %1415 = vmatpush1.msra.mxu0 0.0
          %1416 = vmatprep.subr.mxu0 0.0
          %1417 = vmatpush1.msra.mxu0 0.0
          %1418 = vmatprep.subr.mxu0 0.0
          %1419 = vmatpush1.msra.mxu0 0.0
          %1420 = vmatprep.subr.mxu0 0.0
          %1421 = vmatpush1.msra.mxu0 0.0
          %1422 = vmatprep.subr.mxu0 0.0
          %1423 = vmatpush1.msra.mxu0 0.0
          %1424 = vmatprep.subr.mxu0 0.0
          %1425 = vmatpush1.msra.mxu0 0.0
          %1426 = vmatprep.subr.mxu0 0.0
          %1427 = vmatpush1.msra.mxu0 0.0
          %1428 = vmatprep.subr.mxu0 0.0
          %1429 = vmatpush1.msra.mxu0 0.0
          %1430 = vmatprep.subr.mxu0 0.0
          %1431 = vmatpush1.msra.mxu0 0.0
          %1432 = vmatprep.subr.mxu0 0.0
          %1433 = vmatpush1.msra.mxu0 0.0
          %1434 = vmatprep.subr.mxu0 0.0
          %1435 = vmatpush1.msra.mxu0 0.0
          %1436 = vmatprep.subr.mxu0 0.0
          %1437 = vmatpush1.msra.mxu0 0.0
          %1438 = vmatprep.subr.mxu0 0.0
          %1439 = vmatpush1.msra.mxu0 0.0
          %1440 = vmatprep.mubr.f32.mxu0 0.0
          %1441 = vmatmul.mubr.f32.gmra.mrb[0].mxu0 %v1370
          %v1442 = vpop.f32.mrb[0].mxu0
          %v1443 = vadd.f32 0.0, %v1442
          %v1444 = vpop.f32.mrb[0].mxu0
          %1445 = vdwg.mxu0
          %v1446 = vxor.u32 %v1443, 2147483648
          %v1447 = vmul.f32 %v1446, 1.442695
          %v1448 = vpow.pop %v1447
          %v1449 = vadd.f32 %v1448, 1.0
          %v1450 = vrcp.pop %v1449
          %v1451 = vmul.f32 1.0, %v1450
          %v1452 = vsub.f32 1.0, %v1451
          %v1454 = vcombine.high %v1452, %v1452
          %v1456 = vunpack.c.l.s4 1966171168
          %v1457 = vunpack.c.0.s8 %v1456
          %v1458 = vlaneseq
          %v1459 = vshrl.u32 %v1458, 7
          %v1460 = vsub.s32 %v1457, %v1459
          %v1461 = vrot.slane %v1452, %v1460
          %v1463 = vunpack.c.l.s4 1966171168
          %v1464 = vunpack.c.0.s8 %v1463
          %v1465 = vlaneseq
          %v1466 = vshrl.u32 %v1465, 7
          %v1467 = vsub.s32 %v1464, %v1466
          %v1468 = vrot.slane %v1454, %v1467
          %v1469 = vcombine.high %v1461, %v1461
          %v1470 = vcombine.high %v1468, %v1468
          %v1472 = vunpack.c.l.s4 1966171168
          %v1473 = vunpack.c.0.s8 %v1472
          %v1474 = vlaneseq
          %v1475 = vshrl.u32 %v1474, 7
          %v1476 = vsub.s32 %v1473, %v1475
          %v1477 = vrot.slane %v1461, %v1476
          %v1479 = vunpack.c.l.s4 1966171168
          %v1480 = vunpack.c.0.s8 %v1479
          %v1481 = vlaneseq
          %v1482 = vshrl.u32 %v1481, 7
          %v1483 = vsub.s32 %v1480, %v1482
          %v1484 = vrot.slane %v1468, %v1483
          %v1486 = vunpack.c.l.s4 1966171168
          %v1487 = vunpack.c.0.s8 %v1486
          %v1488 = vlaneseq
          %v1489 = vshrl.u32 %v1488, 7
          %v1490 = vsub.s32 %v1487, %v1489
          %v1491 = vrot.slane %v1469, %v1490
          %v1493 = vunpack.c.l.s4 1966171168
          %v1494 = vunpack.c.0.s8 %v1493
          %v1495 = vlaneseq
          %v1496 = vshrl.u32 %v1495, 7
          %v1497 = vsub.s32 %v1494, %v1496
          %v1498 = vrot.slane %v1470, %v1497
          %v1499 = vcombine.high %v1477, %v1477
          %v1500 = vcombine.high %v1484, %v1484
          %v1501 = vcombine.high %v1491, %v1491
          %1509 = vst.msk [vmem:[%s229] sm:$0x1] %vm1134, %v1477
          %1510 = vst.msk [vmem:[%s229 + $0x1] sm:$0x1] %vm1134, %v1491
          %1511 = vst.msk [vmem:[%s229 + $0x2] sm:$0x1] %vm1134, %v1499
          %1512 = vst.msk [vmem:[%s229 + $0x3] sm:$0x1] %vm1134, %v1501
          %1513 = vst.msk [vmem:[%s229 + $0x4] sm:$0x1] %vm1134, %v1484
          %1514 = vst.msk [vmem:[%s229 + $0x5] sm:$0x1] %vm1134, %v1498
          %1515 = vst.msk [vmem:[%s229 + $0x6] sm:$0x1] %vm1134, %v1500
        $region48: #{tpu_custom_call.1} parent=35 // pred_fallthru
          _
        %s1516 = sand.u32 %s132, 1
        %s1517 = scalar_lea.sflag [#allocation5], %s1516
        %s1518 = sand.u32 %s132, 1
        %s1519 = smul.addr %s1518, 7
        %s1520 = scalar_lea.vmem [#allocation6], %s1519
        // Predicated region
        $region49: #{tpu_custom_call.1} parent=35 // pred_check
          %p1521 = pneg %p142
        $region50: #{tpu_custom_call.1} parent=35 // pred_check_branch
          %1523 = sbr.rel (%p1521) target = $region52
        $region51: #{tpu_custom_call.1} parent=35 // pred_region
          %s1525 = ssub.s32 112, 112
          %1526 = vsyncadd %s1517, %s1525
          %s1527 = smul.addr %s25, 7
          %s1528 = smul.addr %s1527, 16
          %s1529 = scalar_lea.hbm %s4, %s1528
          %s1530 = sshll.u32 %s1520, 4
          %s1531 = int_to_ptr.vmem [resolvable:$true] %s1530
          %1536 = dma.vmem_to_hbm [thread:$0]  %s1531, 112, %s1529, %s1517, 16, 16, 1
        $region52: #{tpu_custom_call.1} parent=35 // pred_fallthru
          _
      $region36: #{tpu_custom_call.1} parent=5 // pred_fallthru
        _
      %p1537 = scmp.le.s32.totalorder 2, %s16
      // Predicated region
      $region53: #{tpu_custom_call.1} parent=5 // pred_check
        %p1538 = pneg %p1537
      $region54: #{tpu_custom_call.1} parent=5 // pred_check_branch
        %1540 = sbr.rel (%p1538) target = $region56
      $region55: #{tpu_custom_call.1} parent=5 // pred_region
        %s1541 = ssub.s32 %s16, 2
        // Predicated region
        $region57: #{tpu_custom_call.1} parent=55 // pred_check
          %p1542 = pneg %p148
        $region58: #{tpu_custom_call.1} parent=55 // pred_check_branch
          %1544 = sbr.rel (%p1542) target = $region60
        $region59: #{tpu_custom_call.1} parent=55 // pred_region
          %s1545 = sand.u32 %s133, 1
          %s1546 = scalar_lea.sflag [#allocation5], %s1545
          %s1547 = sand.u32 %s133, 1
          %s1548 = smul.addr %s1547, 7
          %s1549 = scalar_lea.vmem [#allocation6], %s1548
          %1550 = dma.done %s1546, 112
        $region60: #{tpu_custom_call.1} parent=55 // pred_fallthru
          _
      $region56: #{tpu_custom_call.1} parent=5 // pred_fallthru
        _
    $region6: #{tpu_custom_call.1} parent=1 // loop_footer
      %s20 = sadd.s32 1, %s16
    $region7: #{tpu_custom_call.1} parent=1 // loop_footer_branch
      %15 = sbr.rel target = $region3
    $region8: #{tpu_custom_call.1} parent=1 // loop_exit
      _
    %1551 = vsyncpa [#allocation4], 1
    %s1552 = scalar_lea.sflag [#allocation4], 1
    %1553 = vsyncpa %s1552, 1
    %1554 = vsyncpa [#allocation5], 1
    %s1555 = scalar_lea.sflag [#allocation5], 1
    %1556 = vsyncpa %s1555, 1

</llo_original>
